<compile_context>
chip_gen: v6e
topology: v6e:2x2x1
jax: 0.10.0
libtpu: 0.0.40
codegen_flags: <defaults>
</compile_context>

<pallas_src>
import jax
import jax.numpy as jnp
from jax import lax
from jax.experimental import pallas as pl
from jax.experimental.pallas import tpu as pltpu


_VMEM_LIMIT = 64 * 1024 * 1024   # explicit scoped-VMEM budget (<= physical on all gens)


def _round_up(x, m):
    return (x + m - 1) // m * m


def _pad_gates(w, H, Hp):
    """Pad each of the 4 LSTM gate blocks along the hidden axis from H to Hp with
    zeros (w has leading dim 4H -> 4Hp). Exact: padded units stay at h == 0."""
    if Hp == H:
        return w
    tail = w.shape[1:]
    w4 = w.reshape((4, H) + tail)
    pad = [(0, 0), (0, Hp - H)] + [(0, 0)] * len(tail)
    return jnp.pad(w4, pad).reshape((4 * Hp,) + tail)


# ---------------------------------------------------------------------------
# Generic tiled matmul + bias kernel (input projection and vocab FC).
# bf16 operands on the MXU, f32 VMEM accumulator, K-reduction grid axis.
# ---------------------------------------------------------------------------
def _matmul_bias_kernel(x_ref, w_ref, b_ref, o_ref, acc_ref):
    k = pl.program_id(2)

    @pl.when(k == 0)
    def _():
        acc_ref[...] = jnp.zeros_like(acc_ref)

    acc_ref[...] += jnp.dot(x_ref[...], w_ref[...],
                            preferred_element_type=jnp.float32)

    @pl.when(k == pl.num_programs(2) - 1)
    def _():
        o_ref[...] = (acc_ref[...] + b_ref[...]).astype(o_ref.dtype)


def _matmul_bias(x, w, b, out_dtype=jnp.float32,
                 tm_cap=512, tn_cap=512, tk_cap=1024):
    """x:(M,K) @ w:(K,N) + b:(N,) -> PADDED (M_pad, N_pad) in out_dtype.

    M padded to x8, N padded to x128 (lane-dense output stores), K tiled only when
    large.  Returns the padded result so the caller slices at most once."""
    M, K = x.shape
    _, N = w.shape

    if M <= tm_cap:
        tm = M_pad = _round_up(max(M, 8), 8)
    else:
        tm = tm_cap
        M_pad = _round_up(M, tm_cap)
    if N <= tn_cap:
        tn = N_pad = _round_up(max(N, 128), 128)
    else:
        tn = tn_cap
        N_pad = _round_up(N, tn_cap)
    if K <= tk_cap:
        tk = K_pad = K
    else:
        tk = tk_cap
        K_pad = _round_up(K, tk_cap)

    if M_pad != M or K_pad != K:
        x = jnp.pad(x, ((0, M_pad - M), (0, K_pad - K)))
    if K_pad != K or N_pad != N:
        w = jnp.pad(w, ((0, K_pad - K), (0, N_pad - N)))
    b2 = b.reshape(1, N).astype(jnp.float32)
    if N_pad != N:
        b2 = jnp.pad(b2, ((0, 0), (0, N_pad - N)))

    return pl.pallas_call(
        _matmul_bias_kernel,
        out_shape=jax.ShapeDtypeStruct((M_pad, N_pad), out_dtype),
        grid_spec=pltpu.PrefetchScalarGridSpec(
            num_scalar_prefetch=0,
            grid=(M_pad // tm, N_pad // tn, K_pad // tk),
            in_specs=[
                pl.BlockSpec((tm, tk), lambda i, j, k: (i, k)),
                pl.BlockSpec((tk, tn), lambda i, j, k: (k, j)),
                pl.BlockSpec((1, tn), lambda i, j, k: (0, j)),
            ],
            out_specs=pl.BlockSpec((tm, tn), lambda i, j, k: (i, j)),
            scratch_shapes=[pltpu.VMEM((tm, tn), jnp.float32)],
        ),
        compiler_params=pltpu.CompilerParams(
            dimension_semantics=("parallel", "parallel", "arbitrary"),
            vmem_limit_bytes=_VMEM_LIMIT),
    )(x, w, b2)


# ---------------------------------------------------------------------------
# LSTM recurrence: time-chunked grid, h/c carried in VMEM scratch across chunks,
# optional batch-parallel leading axis (v7x megacore).
# ---------------------------------------------------------------------------
def _lstm_recurrence_kernel(xw_ref, wh_ref, h_all_ref, h_sc, c_sc):
    """xw_ref : (Tc, Bc, 4Hp) bf16   precomputed x_t @ W_ih.T + (b_ih + b_hh)
    wh_ref    : (Hp, 4Hp)     bf16   W_hh.T (gate-padded)
    h_all_ref : (Tc, Bc, Hp)  bf16   hidden states for this time chunk (output)
    h_sc,c_sc : (Bc, Hp)      f32    state carried across time chunks."""
    @pl.when(pl.program_id(1) == 0)
    def _():
        h_sc[...] = jnp.zeros_like(h_sc)
        c_sc[...] = jnp.zeros_like(c_sc)

    Tc = xw_ref.shape[0]
    Hp = wh_ref.shape[0]
    wh = wh_ref[...]                                       # resident bf16 weight

    def step(t, carry):
        h, c = carry                                       # f32 (Bc, Hp)
        gates = xw_ref[t].astype(jnp.float32) + jnp.dot(
            h.astype(jnp.bfloat16), wh, preferred_element_type=jnp.float32)
        # Only 4Hp transcendental elements per step; all slices lane-aligned.
        if_sig = jax.nn.sigmoid(gates[:, 0:2 * Hp])        # i | f
        g_g = jnp.tanh(gates[:, 2 * Hp:3 * Hp])
        o_g = jax.nn.sigmoid(gates[:, 3 * Hp:4 * Hp])
        i_g = if_sig[:, :Hp]
        f_g = if_sig[:, Hp:]
        c_new = f_g * c + i_g * g_g
        h_new = o_g * jnp.tanh(c_new)
        h_all_ref[t] = h_new.astype(h_all_ref.dtype)
        return h_new, c_new

    if Tc % 8 == 0:
        unroll = 8
    elif Tc % 4 == 0:
        unroll = 4
    else:
        unroll = 1
    h_f, c_f = lax.fori_loop(0, Tc, step, (h_sc[...], c_sc[...]), unroll=unroll)
    h_sc[...] = h_f
    c_sc[...] = c_f


def _lstm_recurrence(xw, wh, out_dtype=jnp.bfloat16):
    T, B, G = xw.shape            # G = 4 * Hp
    Hp = wh.shape[0]

    # Batch chunking: 2 chunks (one per v7x TensorCore) when each keeps >=8 sublanes.
    nb = 2 if (B % 16 == 0) else 1
    Bc = B // nb

    # Time chunking: largest divisor of T whose xw chunk fits a modest VMEM budget.
    budget = 4 * 1024 * 1024
    Tc = 1
    for tc in range(1, T + 1):
        if T % tc == 0 and tc * Bc * G * xw.dtype.itemsize <= budget:
            Tc = tc
    nt = T // Tc

    return pl.pallas_call(
        _lstm_recurrence_kernel,
        out_shape=jax.ShapeDtypeStruct((T, B, Hp), out_dtype),
        grid_spec=pltpu.PrefetchScalarGridSpec(
            num_scalar_prefetch=0,
            grid=(nb, nt),
            in_specs=[
                pl.BlockSpec((Tc, Bc, G), lambda b, t: (t, b, 0)),
                pl.BlockSpec((Hp, G), lambda b, t: (0, 0)),
            ],
            out_specs=pl.BlockSpec((Tc, Bc, Hp), lambda b, t: (t, b, 0)),
            scratch_shapes=[pltpu.VMEM((Bc, Hp), jnp.float32),
                            pltpu.VMEM((Bc, Hp), jnp.float32)],
        ),
        compiler_params=pltpu.CompilerParams(
            dimension_semantics=("parallel", "arbitrary"),
            vmem_limit_bytes=_VMEM_LIMIT),
    )(xw, wh)


# ---------------------------------------------------------------------------
# Full forward
# ---------------------------------------------------------------------------
@jax.jit
def neural_language_model_forward(token_ids, params):
    """token_ids: (B, T) int32.  Returns logits (B, T, V) float32."""
    emb = params["embedding"]                        # (V, E)
    w_ih = params["w_ih"]                            # (4H, E)
    w_hh = params["w_hh"]                            # (4H, H)
    b_ih = params["b_ih"]                            # (4H,)
    b_hh = params["b_hh"]                            # (4H,)
    w_fc = params["w_fc"]                            # (V, H)
    b_fc = params["b_fc"]                            # (V,)

    B, T = token_ids.shape
    V, E = emb.shape
    H = w_hh.shape[1]
    Hp = _round_up(H, 128)                           # lane-aligned gate slices

    # --- weight prep: gate axis padded to Hp, bf16 MXU operands ---
    wx = jnp.transpose(_pad_gates(w_ih, H, Hp)).astype(jnp.bfloat16)   # (E, 4Hp)
    b_gate = _pad_gates(b_ih + b_hh, H, Hp)                            # (4Hp,) f32
    w_hh_p = _pad_gates(w_hh, H, Hp)                                   # (4Hp, H)
    if Hp != H:
        w_hh_p = jnp.pad(w_hh_p, ((0, 0), (0, Hp - H)))
    wh = jnp.transpose(w_hh_p).astype(jnp.bfloat16)                    # (Hp, 4Hp)
    w_fc_p = w_fc if Hp == H else jnp.pad(w_fc, ((0, 0), (0, Hp - H)))
    wfc = jnp.transpose(w_fc_p).astype(jnp.bfloat16)                   # (Hp, V)

    # Embedding gather directly in time-major order (T, B, E), bf16.
    x_tm = jnp.take(emb.astype(jnp.bfloat16), token_ids.T, axis=0)
    x2d = x_tm.reshape(T * B, E)

    # --- Phase 1: input projection for all timesteps (parallel Pallas matmul) ---
    xw2d = _matmul_bias(x2d, wx, b_gate, out_dtype=jnp.bfloat16)       # (Mp, 4Hp)
    if xw2d.shape[0] != T * B:
        xw2d = xw2d[:T * B]
    xw = xw2d.reshape(T, B, 4 * Hp)

    # --- Phase 2: sequential recurrence (time-chunked, batch-parallel) ---
    h_all = _lstm_recurrence(xw, wh, out_dtype=jnp.bfloat16)           # (T, B, Hp)

    # Dropout(p=0.5): eval-mode identity.
    # TODO(synk): training-mode dropout RNG is not reproduced.

    # --- Phase 3: vocab FC, batch-major input (no logits transpose) ---
    h_bt = jnp.transpose(h_all, (1, 0, 2)).reshape(B * T, Hp)
    logits2d = _matmul_bias(h_bt, wfc, b_fc, out_dtype=jnp.float32)    # (Mp, Vp)
    M_pad, V_pad = logits2d.shape
    if M_pad != B * T:
        logits2d = logits2d[:B * T]
    logits = logits2d.reshape(B, T, V_pad)
    if V_pad != V:
        logits = logits[:, :, :V]
    return logits


# ---------------------------------------------------------------------------
# Pure-JAX f32 reference + test
# ---------------------------------------------------------------------------
def _reference_forward(token_ids, params):
    emb = params["embedding"]
    w_ih, w_hh = params["w_ih"], params["w_hh"]
    b_ih, b_hh = params["b_ih"], params["b_hh"]
    w_fc, b_fc = params["w_fc"], params["b_fc"]
    H = w_hh.shape[1]
    B, T = token_ids.shape

    x = jnp.take(emb, token_ids, axis=0)             # (B, T, E)
    x = jnp.transpose(x, (1, 0, 2))                  # (T, B, E)

    def step(carry, x_t):
        h, c = carry
        gates = x_t @ w_ih.T + h @ w_hh.T + b_ih + b_hh
        i = jax.nn.sigmoid(gates[:, 0 * H:1 * H])
        f = jax.nn.sigmoid(gates[:, 1 * H:2 * H])
        g = jnp.tanh(gates[:, 2 * H:3 * H])
        o = jax.nn.sigmoid(gates[:, 3 * H:4 * H])
        c = f * c + i * g
        h = o * jnp.tanh(c)
        return (h, c), h

    h0 = jnp.zeros((B, H), jnp.float32)
    c0 = jnp.zeros((B, H), jnp.float32)
    _, hs = lax.scan(step, (h0, c0), x)              # (T, B, H)
    logits = hs @ w_fc.T + b_fc                      # (T, B, V)
    return jnp.transpose(logits, (1, 0, 2))          # (B, T, V)


def init_params(key, vocab_size, embedding_dim, hidden_dim):
    ks = jax.random.split(key, 7)
    H = hidden_dim
    scale = 1.0 / jnp.sqrt(H)
    return {
        "embedding": jax.random.normal(ks[0], (vocab_size, embedding_dim),
                                       jnp.float32) * 0.1,
        "w_ih": jax.random.uniform(ks[1], (4 * H, embedding_dim), jnp.float32,
                                   -scale, scale),
        "w_hh": jax.random.uniform(ks[2], (4 * H, H), jnp.float32, -scale, scale),
        "b_ih": jax.random.uniform(ks[3], (4 * H,), jnp.float32, -scale, scale),
        "b_hh": jax.random.uniform(ks[4], (4 * H,), jnp.float32, -scale, scale),
        "w_fc": jax.random.uniform(ks[5], (vocab_size, H), jnp.float32,
                                   -scale, scale),
        "b_fc": jax.random.uniform(ks[6], (vocab_size,), jnp.float32,
                                   -scale, scale),
    }


if __name__ == "__main__":
    VOCAB, EMB, HID = 64, 32, 32
    BATCH, SEQ = 2, 8

    key = jax.random.PRNGKey(0)
    k_params, k_tok = jax.random.split(key)
    params = init_params(k_params, VOCAB, EMB, HID)
    token_ids = jax.random.randint(k_tok, (BATCH, SEQ), 0, VOCAB, jnp.int32)

    logits = neural_language_model_forward(token_ids, params)
    logits = jax.block_until_ready(logits)

    ref = _reference_forward(token_ids, params)
    assert logits.shape == (BATCH, SEQ, VOCAB)
    # bf16 MXU operands (f32 accumulation) -> loose tolerance vs the f32 reference.
    assert jnp.allclose(logits, ref, atol=2e-2, rtol=2e-2), "mismatch vs reference"

    print("KERNEL_OK")
</pallas_src>

<mosaic_0001>
module attributes {stable_mosaic.version = 11 : i64} {
  func.func @_matmul_bias_kernel(%arg0: i32, %arg1: i32, %arg2: i32, %arg3: memref<16x32xbf16, #tpu.memory_space<vmem>>, %arg4: memref<32x512xbf16, #tpu.memory_space<vmem>>, %arg5: memref<1x512xf32, #tpu.memory_space<vmem>>, %arg6: memref<16x512xbf16, #tpu.memory_space<vmem>>, %arg7: memref<16x512xf32, #tpu.memory_space<vmem>>) attributes {dimension_semantics = [#tpu.dimension_semantics<parallel>, #tpu.dimension_semantics<parallel>, #tpu.dimension_semantics<arbitrary>], iteration_bounds = array<i64: 1, 1, 1>, scalar_prefetch = 0 : i64, scratch_operands = 1 : i64, tpu.core_type = #tpu.core_type<tc>, window_params = [{transform_indices = @transform_0, window_bounds = array<i64: 16, 32>}, {transform_indices = @transform_1, window_bounds = array<i64: 32, 512>}, {transform_indices = @transform_2, window_bounds = array<i64: 1, 512>}, {transform_indices = @transform_3, window_bounds = array<i64: 16, 512>}]} {
    %c0_i32 = arith.constant 0 : i32
    %0 = arith.cmpi eq, %arg2, %c0_i32 : i32
    %1 = arith.extui %0 : i1 to i32
    %c0_i32_0 = arith.constant 0 : i32
    %2 = arith.cmpi ne, %1, %c0_i32_0 : i32
    scf.if %2 {
      %cst_10 = arith.constant 0.000000e+00 : f32
      %12 = vector.broadcast %cst_10 : f32 to vector<16x512xf32>
      %c0_11 = arith.constant 0 : index
      %c0_12 = arith.constant 0 : index
      %13 = vector.load %arg7[%c0_11, %c0_12] : memref<16x512xf32, #tpu.memory_space<vmem>>, vector<16x512xf32>
      tpu.vector_store %arg7[%c0_11, %c0_12], %12 {strides = array<i32>} : memref<16x512xf32, #tpu.memory_space<vmem>>, vector<16x512xf32>,
    } else {
    }
    %c0 = arith.constant 0 : index
    %c0_1 = arith.constant 0 : index
    %3 = vector.load %arg7[%c0, %c0_1] : memref<16x512xf32, #tpu.memory_space<vmem>>, vector<16x512xf32>
    %c0_2 = arith.constant 0 : index
    %c0_3 = arith.constant 0 : index
    %4 = vector.load %arg3[%c0_2, %c0_3] : memref<16x32xbf16, #tpu.memory_space<vmem>>, vector<16x32xbf16>
    %c0_4 = arith.constant 0 : index
    %c0_5 = arith.constant 0 : index
    %5 = vector.load %arg4[%c0_4, %c0_5] : memref<32x512xbf16, #tpu.memory_space<vmem>>, vector<32x512xbf16>
    %cst = arith.constant dense<0.000000e+00> : vector<16x512xf32>
    %6 = tpu.matmul %4, %5, %cst {dimension_numbers = #tpu.dot_dimension_numbers<[1], [0], [0], [1], [0, 0, 1, 1], [], []>} : vector<16x32xbf16>, vector<32x512xbf16>, vector<16x512xf32> -> vector<16x512xf32>
    %7 = arith.addf %3, %6 : vector<16x512xf32>
    %c0_6 = arith.constant 0 : index
    %c0_7 = arith.constant 0 : index
    %8 = vector.load %arg7[%c0_6, %c0_7] : memref<16x512xf32, #tpu.memory_space<vmem>>, vector<16x512xf32>
    tpu.vector_store %arg7[%c0_6, %c0_7], %7 {strides = array<i32>} : memref<16x512xf32, #tpu.memory_space<vmem>>, vector<16x512xf32>,
    %c0_i32_8 = arith.constant 0 : i32
    %9 = arith.cmpi eq, %arg2, %c0_i32_8 : i32
    %10 = arith.extui %9 : i1 to i32
    %c0_i32_9 = arith.constant 0 : i32
    %11 = arith.cmpi ne, %10, %c0_i32_9 : i32
    scf.if %11 {
      %c0_10 = arith.constant 0 : index
      %c0_11 = arith.constant 0 : index
      %12 = vector.load %arg7[%c0_10, %c0_11] : memref<16x512xf32, #tpu.memory_space<vmem>>, vector<16x512xf32>
      %c0_12 = arith.constant 0 : index
      %c0_13 = arith.constant 0 : index
      %13 = vector.load %arg5[%c0_12, %c0_13] : memref<1x512xf32, #tpu.memory_space<vmem>>, vector<1x512xf32>
      %14 = vector.broadcast %13 : vector<1x512xf32> to vector<16x512xf32>
      %15 = arith.addf %12, %14 : vector<16x512xf32>
      %16 = arith.truncf %15 : vector<16x512xf32> to vector<16x512xbf16>
      %c0_14 = arith.constant 0 : index
      %c0_15 = arith.constant 0 : index
      %17 = vector.load %arg6[%c0_14, %c0_15] : memref<16x512xbf16, #tpu.memory_space<vmem>>, vector<16x512xbf16>
      tpu.vector_store %arg6[%c0_14, %c0_15], %16 {strides = array<i32>} : memref<16x512xbf16, #tpu.memory_space<vmem>>, vector<16x512xbf16>,
    } else {
    }
    return
  }
  func.func @transform_0(%arg0: i32, %arg1: i32, %arg2: i32) -> (i32, i32) {
    %c0_i32 = arith.constant 0 : i32
    return %arg0, %arg2 : i32, i32
  }
  func.func @transform_1(%arg0: i32, %arg1: i32, %arg2: i32) -> (i32, i32) {
    %c0_i32 = arith.constant 0 : i32
    return %arg2, %arg1 : i32, i32
  }
  func.func @transform_2(%arg0: i32, %arg1: i32, %arg2: i32) -> (i32, i32) {
    %c0_i32 = arith.constant 0 : i32
    %c0_i32_0 = arith.constant 0 : i32
    return %c0_i32, %arg1 : i32, i32
  }
  func.func @transform_3(%arg0: i32, %arg1: i32, %arg2: i32) -> (i32, i32) {
    %c0_i32 = arith.constant 0 : i32
    return %arg0, %arg1 : i32, i32
  }
}

module attributes {stable_mosaic.version = 11 : i64} {
  func.func @_lstm_recurrence_kernel(%arg0: i32, %arg1: i32, %arg2: memref<8x2x512xbf16, #tpu.memory_space<vmem>>, %arg3: memref<128x512xbf16, #tpu.memory_space<vmem>>, %arg4: memref<8x2x128xbf16, #tpu.memory_space<vmem>>, %arg5: memref<2x128xf32, #tpu.memory_space<vmem>>, %arg6: memref<2x128xf32, #tpu.memory_space<vmem>>) attributes {dimension_semantics = [#tpu.dimension_semantics<parallel>, #tpu.dimension_semantics<arbitrary>], iteration_bounds = array<i64: 1, 1>, scalar_prefetch = 0 : i64, scratch_operands = 2 : i64, tpu.core_type = #tpu.core_type<tc>, window_params = [{transform_indices = @transform_0, window_bounds = array<i64: 8, 2, 512>}, {pipeline_mode = #tpu.pipeline_mode<synchronous>, transform_indices = @transform_1, window_bounds = array<i64: 128, 512>}, {transform_indices = @transform_2, window_bounds = array<i64: 8, 2, 128>}]} {
    %c0_i32 = arith.constant 0 : i32
    %0 = arith.cmpi eq, %arg1, %c0_i32 : i32
    %1 = arith.extui %0 : i1 to i32
    %c0_i32_0 = arith.constant 0 : i32
    %2 = arith.cmpi ne, %1, %c0_i32_0 : i32
    scf.if %2 {
      %cst_66 = arith.constant 0.000000e+00 : f32
      %272 = vector.broadcast %cst_66 : f32 to vector<2x128xf32>
      %c0_67 = arith.constant 0 : index
      %c0_68 = arith.constant 0 : index
      %273 = vector.load %arg5[%c0_67, %c0_68] : memref<2x128xf32, #tpu.memory_space<vmem>>, vector<2x128xf32>
      tpu.vector_store %arg5[%c0_67, %c0_68], %272 {strides = array<i32>} : memref<2x128xf32, #tpu.memory_space<vmem>>, vector<2x128xf32>,
      %cst_69 = arith.constant 0.000000e+00 : f32
      %274 = vector.broadcast %cst_69 : f32 to vector<2x128xf32>
      %c0_70 = arith.constant 0 : index
      %c0_71 = arith.constant 0 : index
      %275 = vector.load %arg6[%c0_70, %c0_71] : memref<2x128xf32, #tpu.memory_space<vmem>>, vector<2x128xf32>
      tpu.vector_store %arg6[%c0_70, %c0_71], %274 {strides = array<i32>} : memref<2x128xf32, #tpu.memory_space<vmem>>, vector<2x128xf32>,
    } else {
    }
    %c0 = arith.constant 0 : index
    %c0_1 = arith.constant 0 : index
    %3 = vector.load %arg3[%c0, %c0_1] : memref<128x512xbf16, #tpu.memory_space<vmem>>, vector<128x512xbf16>
    %c0_2 = arith.constant 0 : index
    %c0_3 = arith.constant 0 : index
    %4 = vector.load %arg5[%c0_2, %c0_3] : memref<2x128xf32, #tpu.memory_space<vmem>>, vector<2x128xf32>
    %c0_4 = arith.constant 0 : index
    %c0_5 = arith.constant 0 : index
    %5 = vector.load %arg6[%c0_4, %c0_5] : memref<2x128xf32, #tpu.memory_space<vmem>>, vector<2x128xf32>
    %c0_i32_6 = arith.constant 0 : i32
    %6 = arith.index_cast %c0_i32_6 : i32 to index
    %c0_7 = arith.constant 0 : index
    %c0_8 = arith.constant 0 : index
    %7 = vector.load %arg2[%6, %c0_7, %c0_8] : memref<8x2x512xbf16, #tpu.memory_space<vmem>>, vector<1x2x512xbf16>
    %8 = vector.shape_cast %7 : vector<1x2x512xbf16> to vector<2x512xbf16>
    %9 = arith.extf %8 : vector<2x512xbf16> to vector<2x512xf32>
    %10 = arith.truncf %4 : vector<2x128xf32> to vector<2x128xbf16>
    %cst = arith.constant dense<0.000000e+00> : vector<2x512xf32>
    %11 = tpu.matmul %10, %3, %cst {dimension_numbers = #tpu.dot_dimension_numbers<[1], [0], [0], [1], [0, 0, 1, 1], [], []>} : vector<2x128xbf16>, vector<128x512xbf16>, vector<2x512xf32> -> vector<2x512xf32>
    %12 = arith.addf %9, %11 : vector<2x512xf32>
    %13 = vector.extract_strided_slice %12 {offsets = [0, 0], sizes = [2, 256], strides = [1, 1]} : vector<2x512xf32> to vector<2x256xf32>
    %14 = arith.negf %13 : vector<2x256xf32>
    %15 = math.exp %14 : vector<2x256xf32>
    %cst_9 = arith.constant 1.000000e+00 : f32
    %16 = vector.broadcast %cst_9 : f32 to vector<2x256xf32>
    %17 = arith.addf %16, %15 : vector<2x256xf32>
    %18 = arith.divf %16, %17 : vector<2x256xf32>
    %19 = vector.extract_strided_slice %12 {offsets = [0, 256], sizes = [2, 128], strides = [1, 1]} : vector<2x512xf32> to vector<2x128xf32>
    %20 = math.tanh %19 : vector<2x128xf32>
    %21 = vector.extract_strided_slice %12 {offsets = [0, 384], sizes = [2, 128], strides = [1, 1]} : vector<2x512xf32> to vector<2x128xf32>
    %22 = arith.negf %21 : vector<2x128xf32>
    %23 = math.exp %22 : vector<2x128xf32>
    %cst_10 = arith.constant 1.000000e+00 : f32
    %24 = vector.broadcast %cst_10 : f32 to vector<2x128xf32>
    %25 = arith.addf %24, %23 : vector<2x128xf32>
    %26 = arith.divf %24, %25 : vector<2x128xf32>
    %27 = vector.extract_strided_slice %18 {offsets = [0, 0], sizes = [2, 128], strides = [1, 1]} : vector<2x256xf32> to vector<2x128xf32>
    %28 = vector.extract_strided_slice %18 {offsets = [0, 128], sizes = [2, 128], strides = [1, 1]} : vector<2x256xf32> to vector<2x128xf32>
    %29 = arith.mulf %28, %5 : vector<2x128xf32>
    %30 = arith.mulf %27, %20 : vector<2x128xf32>
    %31 = arith.addf %29, %30 : vector<2x128xf32>
    %32 = math.tanh %31 : vector<2x128xf32>
    %33 = arith.mulf %26, %32 : vector<2x128xf32>
    %34 = arith.truncf %33 : vector<2x128xf32> to vector<2x128xbf16>
    %35 = arith.index_cast %c0_i32_6 : i32 to index
    %c0_11 = arith.constant 0 : index
    %c0_12 = arith.constant 0 : index
    %36 = vector.load %arg4[%35, %c0_11, %c0_12] : memref<8x2x128xbf16, #tpu.memory_space<vmem>>, vector<1x2x128xbf16>
    %37 = vector.shape_cast %36 : vector<1x2x128xbf16> to vector<2x128xbf16>
    %38 = vector.shape_cast %34 : vector<2x128xbf16> to vector<1x2x128xbf16>
    tpu.vector_store %arg4[%35, %c0_11, %c0_12], %38 {strides = array<i32>} : memref<8x2x128xbf16, #tpu.memory_space<vmem>>, vector<1x2x128xbf16>,
    %c1_i32 = arith.constant 1 : i32
    %39 = arith.index_cast %c1_i32 : i32 to index
    %c0_13 = arith.constant 0 : index
    %c0_14 = arith.constant 0 : index
    %40 = vector.load %arg2[%39, %c0_13, %c0_14] : memref<8x2x512xbf16, #tpu.memory_space<vmem>>, vector<1x2x512xbf16>
    %41 = vector.shape_cast %40 : vector<1x2x512xbf16> to vector<2x512xbf16>
    %42 = arith.extf %41 : vector<2x512xbf16> to vector<2x512xf32>
    %43 = arith.truncf %33 : vector<2x128xf32> to vector<2x128xbf16>
    %cst_15 = arith.constant dense<0.000000e+00> : vector<2x512xf32>
    %44 = tpu.matmul %43, %3, %cst_15 {dimension_numbers = #tpu.dot_dimension_numbers<[1], [0], [0], [1], [0, 0, 1, 1], [], []>} : vector<2x128xbf16>, vector<128x512xbf16>, vector<2x512xf32> -> vector<2x512xf32>
    %45 = arith.addf %42, %44 : vector<2x512xf32>
    %46 = vector.extract_strided_slice %45 {offsets = [0, 0], sizes = [2, 256], strides = [1, 1]} : vector<2x512xf32> to vector<2x256xf32>
    %47 = arith.negf %46 : vector<2x256xf32>
    %48 = math.exp %47 : vector<2x256xf32>
    %cst_16 = arith.constant 1.000000e+00 : f32
    %49 = vector.broadcast %cst_16 : f32 to vector<2x256xf32>
    %50 = arith.addf %49, %48 : vector<2x256xf32>
    %51 = arith.divf %49, %50 : vector<2x256xf32>
    %52 = vector.extract_strided_slice %45 {offsets = [0, 256], sizes = [2, 128], strides = [1, 1]} : vector<2x512xf32> to vector<2x128xf32>
    %53 = math.tanh %52 : vector<2x128xf32>
    %54 = vector.extract_strided_slice %45 {offsets = [0, 384], sizes = [2, 128], strides = [1, 1]} : vector<2x512xf32> to vector<2x128xf32>
    %55 = arith.negf %54 : vector<2x128xf32>
    %56 = math.exp %55 : vector<2x128xf32>
    %cst_17 = arith.constant 1.000000e+00 : f32
    %57 = vector.broadcast %cst_17 : f32 to vector<2x128xf32>
    %58 = arith.addf %57, %56 : vector<2x128xf32>
    %59 = arith.divf %57, %58 : vector<2x128xf32>
    %60 = vector.extract_strided_slice %51 {offsets = [0, 0], sizes = [2, 128], strides = [1, 1]} : vector<2x256xf32> to vector<2x128xf32>
    %61 = vector.extract_strided_slice %51 {offsets = [0, 128], sizes = [2, 128], strides = [1, 1]} : vector<2x256xf32> to vector<2x128xf32>
    %62 = arith.mulf %61, %31 : vector<2x128xf32>
    %63 = arith.mulf %60, %53 : vector<2x128xf32>
    %64 = arith.addf %62, %63 : vector<2x128xf32>
    %65 = math.tanh %64 : vector<2x128xf32>
    %66 = arith.mulf %59, %65 : vector<2x128xf32>
    %67 = arith.truncf %66 : vector<2x128xf32> to vector<2x128xbf16>
    %68 = arith.index_cast %c1_i32 : i32 to index
    %c0_18 = arith.constant 0 : index
    %c0_19 = arith.constant 0 : index
    %69 = vector.load %arg4[%68, %c0_18, %c0_19] : memref<8x2x128xbf16, #tpu.memory_space<vmem>>, vector<1x2x128xbf16>
    %70 = vector.shape_cast %69 : vector<1x2x128xbf16> to vector<2x128xbf16>
    %71 = vector.shape_cast %67 : vector<2x128xbf16> to vector<1x2x128xbf16>
    tpu.vector_store %arg4[%68, %c0_18, %c0_19], %71 {strides = array<i32>} : memref<8x2x128xbf16, #tpu.memory_space<vmem>>, vector<1x2x128xbf16>,
    %c2_i32 = arith.constant 2 : i32
    %72 = arith.index_cast %c2_i32 : i32 to index
    %c0_20 = arith.constant 0 : index
    %c0_21 = arith.constant 0 : index
    %73 = vector.load %arg2[%72, %c0_20, %c0_21] : memref<8x2x512xbf16, #tpu.memory_space<vmem>>, vector<1x2x512xbf16>
    %74 = vector.shape_cast %73 : vector<1x2x512xbf16> to vector<2x512xbf16>
    %75 = arith.extf %74 : vector<2x512xbf16> to vector<2x512xf32>
    %76 = arith.truncf %66 : vector<2x128xf32> to vector<2x128xbf16>
    %cst_22 = arith.constant dense<0.000000e+00> : vector<2x512xf32>
    %77 = tpu.matmul %76, %3, %cst_22 {dimension_numbers = #tpu.dot_dimension_numbers<[1], [0], [0], [1], [0, 0, 1, 1], [], []>} : vector<2x128xbf16>, vector<128x512xbf16>, vector<2x512xf32> -> vector<2x512xf32>
    %78 = arith.addf %75, %77 : vector<2x512xf32>
    %79 = vector.extract_strided_slice %78 {offsets = [0, 0], sizes = [2, 256], strides = [1, 1]} : vector<2x512xf32> to vector<2x256xf32>
    %80 = arith.negf %79 : vector<2x256xf32>
    %81 = math.exp %80 : vector<2x256xf32>
    %cst_23 = arith.constant 1.000000e+00 : f32
    %82 = vector.broadcast %cst_23 : f32 to vector<2x256xf32>
    %83 = arith.addf %82, %81 : vector<2x256xf32>
    %84 = arith.divf %82, %83 : vector<2x256xf32>
    %85 = vector.extract_strided_slice %78 {offsets = [0, 256], sizes = [2, 128], strides = [1, 1]} : vector<2x512xf32> to vector<2x128xf32>
    %86 = math.tanh %85 : vector<2x128xf32>
    %87 = vector.extract_strided_slice %78 {offsets = [0, 384], sizes = [2, 128], strides = [1, 1]} : vector<2x512xf32> to vector<2x128xf32>
    %88 = arith.negf %87 : vector<2x128xf32>
    %89 = math.exp %88 : vector<2x128xf32>
    %cst_24 = arith.constant 1.000000e+00 : f32
    %90 = vector.broadcast %cst_24 : f32 to vector<2x128xf32>
    %91 = arith.addf %90, %89 : vector<2x128xf32>
    %92 = arith.divf %90, %91 : vector<2x128xf32>
    %93 = vector.extract_strided_slice %84 {offsets = [0, 0], sizes = [2, 128], strides = [1, 1]} : vector<2x256xf32> to vector<2x128xf32>
    %94 = vector.extract_strided_slice %84 {offsets = [0, 128], sizes = [2, 128], strides = [1, 1]} : vector<2x256xf32> to vector<2x128xf32>
    %95 = arith.mulf %94, %64 : vector<2x128xf32>
    %96 = arith.mulf %93, %86 : vector<2x128xf32>
    %97 = arith.addf %95, %96 : vector<2x128xf32>
    %98 = math.tanh %97 : vector<2x128xf32>
    %99 = arith.mulf %92, %98 : vector<2x128xf32>
    %100 = arith.truncf %99 : vector<2x128xf32> to vector<2x128xbf16>
    %101 = arith.index_cast %c2_i32 : i32 to index
    %c0_25 = arith.constant 0 : index
    %c0_26 = arith.constant 0 : index
    %102 = vector.load %arg4[%101, %c0_25, %c0_26] : memref<8x2x128xbf16, #tpu.memory_space<vmem>>, vector<1x2x128xbf16>
    %103 = vector.shape_cast %102 : vector<1x2x128xbf16> to vector<2x128xbf16>
    %104 = vector.shape_cast %100 : vector<2x128xbf16> to vector<1x2x128xbf16>
    tpu.vector_store %arg4[%101, %c0_25, %c0_26], %104 {strides = array<i32>} : memref<8x2x128xbf16, #tpu.memory_space<vmem>>, vector<1x2x128xbf16>,
    %c3_i32 = arith.constant 3 : i32
    %105 = arith.index_cast %c3_i32 : i32 to index
    %c0_27 = arith.constant 0 : index
    %c0_28 = arith.constant 0 : index
    %106 = vector.load %arg2[%105, %c0_27, %c0_28] : memref<8x2x512xbf16, #tpu.memory_space<vmem>>, vector<1x2x512xbf16>
    %107 = vector.shape_cast %106 : vector<1x2x512xbf16> to vector<2x512xbf16>
    %108 = arith.extf %107 : vector<2x512xbf16> to vector<2x512xf32>
    %109 = arith.truncf %99 : vector<2x128xf32> to vector<2x128xbf16>
    %cst_29 = arith.constant dense<0.000000e+00> : vector<2x512xf32>
    %110 = tpu.matmul %109, %3, %cst_29 {dimension_numbers = #tpu.dot_dimension_numbers<[1], [0], [0], [1], [0, 0, 1, 1], [], []>} : vector<2x128xbf16>, vector<128x512xbf16>, vector<2x512xf32> -> vector<2x512xf32>
    %111 = arith.addf %108, %110 : vector<2x512xf32>
    %112 = vector.extract_strided_slice %111 {offsets = [0, 0], sizes = [2, 256], strides = [1, 1]} : vector<2x512xf32> to vector<2x256xf32>
    %113 = arith.negf %112 : vector<2x256xf32>
    %114 = math.exp %113 : vector<2x256xf32>
    %cst_30 = arith.constant 1.000000e+00 : f32
    %115 = vector.broadcast %cst_30 : f32 to vector<2x256xf32>
    %116 = arith.addf %115, %114 : vector<2x256xf32>
    %117 = arith.divf %115, %116 : vector<2x256xf32>
    %118 = vector.extract_strided_slice %111 {offsets = [0, 256], sizes = [2, 128], strides = [1, 1]} : vector<2x512xf32> to vector<2x128xf32>
    %119 = math.tanh %118 : vector<2x128xf32>
    %120 = vector.extract_strided_slice %111 {offsets = [0, 384], sizes = [2, 128], strides = [1, 1]} : vector<2x512xf32> to vector<2x128xf32>
    %121 = arith.negf %120 : vector<2x128xf32>
    %122 = math.exp %121 : vector<2x128xf32>
    %cst_31 = arith.constant 1.000000e+00 : f32
    %123 = vector.broadcast %cst_31 : f32 to vector<2x128xf32>
    %124 = arith.addf %123, %122 : vector<2x128xf32>
    %125 = arith.divf %123, %124 : vector<2x128xf32>
    %126 = vector.extract_strided_slice %117 {offsets = [0, 0], sizes = [2, 128], strides = [1, 1]} : vector<2x256xf32> to vector<2x128xf32>
    %127 = vector.extract_strided_slice %117 {offsets = [0, 128], sizes = [2, 128], strides = [1, 1]} : vector<2x256xf32> to vector<2x128xf32>
    %128 = arith.mulf %127, %97 : vector<2x128xf32>
    %129 = arith.mulf %126, %119 : vector<2x128xf32>
    %130 = arith.addf %128, %129 : vector<2x128xf32>
    %131 = math.tanh %130 : vector<2x128xf32>
    %132 = arith.mulf %125, %131 : vector<2x128xf32>
    %133 = arith.truncf %132 : vector<2x128xf32> to vector<2x128xbf16>
    %134 = arith.index_cast %c3_i32 : i32 to index
    %c0_32 = arith.constant 0 : index
    %c0_33 = arith.constant 0 : index
    %135 = vector.load %arg4[%134, %c0_32, %c0_33] : memref<8x2x128xbf16, #tpu.memory_space<vmem>>, vector<1x2x128xbf16>
    %136 = vector.shape_cast %135 : vector<1x2x128xbf16> to vector<2x128xbf16>
    %137 = vector.shape_cast %133 : vector<2x128xbf16> to vector<1x2x128xbf16>
    tpu.vector_store %arg4[%134, %c0_32, %c0_33], %137 {strides = array<i32>} : memref<8x2x128xbf16, #tpu.memory_space<vmem>>, vector<1x2x128xbf16>,
    %c4_i32 = arith.constant 4 : i32
    %138 = arith.index_cast %c4_i32 : i32 to index
    %c0_34 = arith.constant 0 : index
    %c0_35 = arith.constant 0 : index
    %139 = vector.load %arg2[%138, %c0_34, %c0_35] : memref<8x2x512xbf16, #tpu.memory_space<vmem>>, vector<1x2x512xbf16>
    %140 = vector.shape_cast %139 : vector<1x2x512xbf16> to vector<2x512xbf16>
    %141 = arith.extf %140 : vector<2x512xbf16> to vector<2x512xf32>
    %142 = arith.truncf %132 : vector<2x128xf32> to vector<2x128xbf16>
    %cst_36 = arith.constant dense<0.000000e+00> : vector<2x512xf32>
    %143 = tpu.matmul %142, %3, %cst_36 {dimension_numbers = #tpu.dot_dimension_numbers<[1], [0], [0], [1], [0, 0, 1, 1], [], []>} : vector<2x128xbf16>, vector<128x512xbf16>, vector<2x512xf32> -> vector<2x512xf32>
    %144 = arith.addf %141, %143 : vector<2x512xf32>
    %145 = vector.extract_strided_slice %144 {offsets = [0, 0], sizes = [2, 256], strides = [1, 1]} : vector<2x512xf32> to vector<2x256xf32>
    %146 = arith.negf %145 : vector<2x256xf32>
    %147 = math.exp %146 : vector<2x256xf32>
    %cst_37 = arith.constant 1.000000e+00 : f32
    %148 = vector.broadcast %cst_37 : f32 to vector<2x256xf32>
    %149 = arith.addf %148, %147 : vector<2x256xf32>
    %150 = arith.divf %148, %149 : vector<2x256xf32>
    %151 = vector.extract_strided_slice %144 {offsets = [0, 256], sizes = [2, 128], strides = [1, 1]} : vector<2x512xf32> to vector<2x128xf32>
    %152 = math.tanh %151 : vector<2x128xf32>
    %153 = vector.extract_strided_slice %144 {offsets = [0, 384], sizes = [2, 128], strides = [1, 1]} : vector<2x512xf32> to vector<2x128xf32>
    %154 = arith.negf %153 : vector<2x128xf32>
    %155 = math.exp %154 : vector<2x128xf32>
    %cst_38 = arith.constant 1.000000e+00 : f32
    %156 = vector.broadcast %cst_38 : f32 to vector<2x128xf32>
    %157 = arith.addf %156, %155 : vector<2x128xf32>
    %158 = arith.divf %156, %157 : vector<2x128xf32>
    %159 = vector.extract_strided_slice %150 {offsets = [0, 0], sizes = [2, 128], strides = [1, 1]} : vector<2x256xf32> to vector<2x128xf32>
    %160 = vector.extract_strided_slice %150 {offsets = [0, 128], sizes = [2, 128], strides = [1, 1]} : vector<2x256xf32> to vector<2x128xf32>
    %161 = arith.mulf %160, %130 : vector<2x128xf32>
    %162 = arith.mulf %159, %152 : vector<2x128xf32>
    %163 = arith.addf %161, %162 : vector<2x128xf32>
    %164 = math.tanh %163 : vector<2x128xf32>
    %165 = arith.mulf %158, %164 : vector<2x128xf32>
    %166 = arith.truncf %165 : vector<2x128xf32> to vector<2x128xbf16>
    %167 = arith.index_cast %c4_i32 : i32 to index
    %c0_39 = arith.constant 0 : index
    %c0_40 = arith.constant 0 : index
    %168 = vector.load %arg4[%167, %c0_39, %c0_40] : memref<8x2x128xbf16, #tpu.memory_space<vmem>>, vector<1x2x128xbf16>
    %169 = vector.shape_cast %168 : vector<1x2x128xbf16> to vector<2x128xbf16>
    %170 = vector.shape_cast %166 : vector<2x128xbf16> to vector<1x2x128xbf16>
    tpu.vector_store %arg4[%167, %c0_39, %c0_40], %170 {strides = array<i32>} : memref<8x2x128xbf16, #tpu.memory_space<vmem>>, vector<1x2x128xbf16>,
    %c5_i32 = arith.constant 5 : i32
    %171 = arith.index_cast %c5_i32 : i32 to index
    %c0_41 = arith.constant 0 : index
    %c0_42 = arith.constant 0 : index
    %172 = vector.load %arg2[%171, %c0_41, %c0_42] : memref<8x2x512xbf16, #tpu.memory_space<vmem>>, vector<1x2x512xbf16>
    %173 = vector.shape_cast %172 : vector<1x2x512xbf16> to vector<2x512xbf16>
    %174 = arith.extf %173 : vector<2x512xbf16> to vector<2x512xf32>
    %175 = arith.truncf %165 : vector<2x128xf32> to vector<2x128xbf16>
    %cst_43 = arith.constant dense<0.000000e+00> : vector<2x512xf32>
    %176 = tpu.matmul %175, %3, %cst_43 {dimension_numbers = #tpu.dot_dimension_numbers<[1], [0], [0], [1], [0, 0, 1, 1], [], []>} : vector<2x128xbf16>, vector<128x512xbf16>, vector<2x512xf32> -> vector<2x512xf32>
    %177 = arith.addf %174, %176 : vector<2x512xf32>
    %178 = vector.extract_strided_slice %177 {offsets = [0, 0], sizes = [2, 256], strides = [1, 1]} : vector<2x512xf32> to vector<2x256xf32>
    %179 = arith.negf %178 : vector<2x256xf32>
    %180 = math.exp %179 : vector<2x256xf32>
    %cst_44 = arith.constant 1.000000e+00 : f32
    %181 = vector.broadcast %cst_44 : f32 to vector<2x256xf32>
    %182 = arith.addf %181, %180 : vector<2x256xf32>
    %183 = arith.divf %181, %182 : vector<2x256xf32>
    %184 = vector.extract_strided_slice %177 {offsets = [0, 256], sizes = [2, 128], strides = [1, 1]} : vector<2x512xf32> to vector<2x128xf32>
    %185 = math.tanh %184 : vector<2x128xf32>
    %186 = vector.extract_strided_slice %177 {offsets = [0, 384], sizes = [2, 128], strides = [1, 1]} : vector<2x512xf32> to vector<2x128xf32>
    %187 = arith.negf %186 : vector<2x128xf32>
    %188 = math.exp %187 : vector<2x128xf32>
    %cst_45 = arith.constant 1.000000e+00 : f32
    %189 = vector.broadcast %cst_45 : f32 to vector<2x128xf32>
    %190 = arith.addf %189, %188 : vector<2x128xf32>
    %191 = arith.divf %189, %190 : vector<2x128xf32>
    %192 = vector.extract_strided_slice %183 {offsets = [0, 0], sizes = [2, 128], strides = [1, 1]} : vector<2x256xf32> to vector<2x128xf32>
    %193 = vector.extract_strided_slice %183 {offsets = [0, 128], sizes = [2, 128], strides = [1, 1]} : vector<2x256xf32> to vector<2x128xf32>
    %194 = arith.mulf %193, %163 : vector<2x128xf32>
    %195 = arith.mulf %192, %185 : vector<2x128xf32>
    %196 = arith.addf %194, %195 : vector<2x128xf32>
    %197 = math.tanh %196 : vector<2x128xf32>
    %198 = arith.mulf %191, %197 : vector<2x128xf32>
    %199 = arith.truncf %198 : vector<2x128xf32> to vector<2x128xbf16>
    %200 = arith.index_cast %c5_i32 : i32 to index
    %c0_46 = arith.constant 0 : index
    %c0_47 = arith.constant 0 : index
    %201 = vector.load %arg4[%200, %c0_46, %c0_47] : memref<8x2x128xbf16, #tpu.memory_space<vmem>>, vector<1x2x128xbf16>
    %202 = vector.shape_cast %201 : vector<1x2x128xbf16> to vector<2x128xbf16>
    %203 = vector.shape_cast %199 : vector<2x128xbf16> to vector<1x2x128xbf16>
    tpu.vector_store %arg4[%200, %c0_46, %c0_47], %203 {strides = array<i32>} : memref<8x2x128xbf16, #tpu.memory_space<vmem>>, vector<1x2x128xbf16>,
    %c6_i32 = arith.constant 6 : i32
    %204 = arith.index_cast %c6_i32 : i32 to index
    %c0_48 = arith.constant 0 : index
    %c0_49 = arith.constant 0 : index
    %205 = vector.load %arg2[%204, %c0_48, %c0_49] : memref<8x2x512xbf16, #tpu.memory_space<vmem>>, vector<1x2x512xbf16>
    %206 = vector.shape_cast %205 : vector<1x2x512xbf16> to vector<2x512xbf16>
    %207 = arith.extf %206 : vector<2x512xbf16> to vector<2x512xf32>
    %208 = arith.truncf %198 : vector<2x128xf32> to vector<2x128xbf16>
    %cst_50 = arith.constant dense<0.000000e+00> : vector<2x512xf32>
    %209 = tpu.matmul %208, %3, %cst_50 {dimension_numbers = #tpu.dot_dimension_numbers<[1], [0], [0], [1], [0, 0, 1, 1], [], []>} : vector<2x128xbf16>, vector<128x512xbf16>, vector<2x512xf32> -> vector<2x512xf32>
    %210 = arith.addf %207, %209 : vector<2x512xf32>
    %211 = vector.extract_strided_slice %210 {offsets = [0, 0], sizes = [2, 256], strides = [1, 1]} : vector<2x512xf32> to vector<2x256xf32>
    %212 = arith.negf %211 : vector<2x256xf32>
    %213 = math.exp %212 : vector<2x256xf32>
    %cst_51 = arith.constant 1.000000e+00 : f32
    %214 = vector.broadcast %cst_51 : f32 to vector<2x256xf32>
    %215 = arith.addf %214, %213 : vector<2x256xf32>
    %216 = arith.divf %214, %215 : vector<2x256xf32>
    %217 = vector.extract_strided_slice %210 {offsets = [0, 256], sizes = [2, 128], strides = [1, 1]} : vector<2x512xf32> to vector<2x128xf32>
    %218 = math.tanh %217 : vector<2x128xf32>
    %219 = vector.extract_strided_slice %210 {offsets = [0, 384], sizes = [2, 128], strides = [1, 1]} : vector<2x512xf32> to vector<2x128xf32>
    %220 = arith.negf %219 : vector<2x128xf32>
    %221 = math.exp %220 : vector<2x128xf32>
    %cst_52 = arith.constant 1.000000e+00 : f32
    %222 = vector.broadcast %cst_52 : f32 to vector<2x128xf32>
    %223 = arith.addf %222, %221 : vector<2x128xf32>
    %224 = arith.divf %222, %223 : vector<2x128xf32>
    %225 = vector.extract_strided_slice %216 {offsets = [0, 0], sizes = [2, 128], strides = [1, 1]} : vector<2x256xf32> to vector<2x128xf32>
    %226 = vector.extract_strided_slice %216 {offsets = [0, 128], sizes = [2, 128], strides = [1, 1]} : vector<2x256xf32> to vector<2x128xf32>
    %227 = arith.mulf %226, %196 : vector<2x128xf32>
    %228 = arith.mulf %225, %218 : vector<2x128xf32>
    %229 = arith.addf %227, %228 : vector<2x128xf32>
    %230 = math.tanh %229 : vector<2x128xf32>
    %231 = arith.mulf %224, %230 : vector<2x128xf32>
    %232 = arith.truncf %231 : vector<2x128xf32> to vector<2x128xbf16>
    %233 = arith.index_cast %c6_i32 : i32 to index
    %c0_53 = arith.constant 0 : index
    %c0_54 = arith.constant 0 : index
    %234 = vector.load %arg4[%233, %c0_53, %c0_54] : memref<8x2x128xbf16, #tpu.memory_space<vmem>>, vector<1x2x128xbf16>
    %235 = vector.shape_cast %234 : vector<1x2x128xbf16> to vector<2x128xbf16>
    %236 = vector.shape_cast %232 : vector<2x128xbf16> to vector<1x2x128xbf16>
    tpu.vector_store %arg4[%233, %c0_53, %c0_54], %236 {strides = array<i32>} : memref<8x2x128xbf16, #tpu.memory_space<vmem>>, vector<1x2x128xbf16>,
    %c7_i32 = arith.constant 7 : i32
    %237 = arith.index_cast %c7_i32 : i32 to index
    %c0_55 = arith.constant 0 : index
    %c0_56 = arith.constant 0 : index
    %238 = vector.load %arg2[%237, %c0_55, %c0_56] : memref<8x2x512xbf16, #tpu.memory_space<vmem>>, vector<1x2x512xbf16>
    %239 = vector.shape_cast %238 : vector<1x2x512xbf16> to vector<2x512xbf16>
    %240 = arith.extf %239 : vector<2x512xbf16> to vector<2x512xf32>
    %241 = arith.truncf %231 : vector<2x128xf32> to vector<2x128xbf16>
    %cst_57 = arith.constant dense<0.000000e+00> : vector<2x512xf32>
    %242 = tpu.matmul %241, %3, %cst_57 {dimension_numbers = #tpu.dot_dimension_numbers<[1], [0], [0], [1], [0, 0, 1, 1], [], []>} : vector<2x128xbf16>, vector<128x512xbf16>, vector<2x512xf32> -> vector<2x512xf32>
    %243 = arith.addf %240, %242 : vector<2x512xf32>
    %244 = vector.extract_strided_slice %243 {offsets = [0, 0], sizes = [2, 256], strides = [1, 1]} : vector<2x512xf32> to vector<2x256xf32>
    %245 = arith.negf %244 : vector<2x256xf32>
    %246 = math.exp %245 : vector<2x256xf32>
    %cst_58 = arith.constant 1.000000e+00 : f32
    %247 = vector.broadcast %cst_58 : f32 to vector<2x256xf32>
    %248 = arith.addf %247, %246 : vector<2x256xf32>
    %249 = arith.divf %247, %248 : vector<2x256xf32>
    %250 = vector.extract_strided_slice %243 {offsets = [0, 256], sizes = [2, 128], strides = [1, 1]} : vector<2x512xf32> to vector<2x128xf32>
    %251 = math.tanh %250 : vector<2x128xf32>
    %252 = vector.extract_strided_slice %243 {offsets = [0, 384], sizes = [2, 128], strides = [1, 1]} : vector<2x512xf32> to vector<2x128xf32>
    %253 = arith.negf %252 : vector<2x128xf32>
    %254 = math.exp %253 : vector<2x128xf32>
    %cst_59 = arith.constant 1.000000e+00 : f32
    %255 = vector.broadcast %cst_59 : f32 to vector<2x128xf32>
    %256 = arith.addf %255, %254 : vector<2x128xf32>
    %257 = arith.divf %255, %256 : vector<2x128xf32>
    %258 = vector.extract_strided_slice %249 {offsets = [0, 0], sizes = [2, 128], strides = [1, 1]} : vector<2x256xf32> to vector<2x128xf32>
    %259 = vector.extract_strided_slice %249 {offsets = [0, 128], sizes = [2, 128], strides = [1, 1]} : vector<2x256xf32> to vector<2x128xf32>
    %260 = arith.mulf %259, %229 : vector<2x128xf32>
    %261 = arith.mulf %258, %251 : vector<2x128xf32>
    %262 = arith.addf %260, %261 : vector<2x128xf32>
    %263 = math.tanh %262 : vector<2x128xf32>
    %264 = arith.mulf %257, %263 : vector<2x128xf32>
    %265 = arith.truncf %264 : vector<2x128xf32> to vector<2x128xbf16>
    %266 = arith.index_cast %c7_i32 : i32 to index
    %c0_60 = arith.constant 0 : index
    %c0_61 = arith.constant 0 : index
    %267 = vector.load %arg4[%266, %c0_60, %c0_61] : memref<8x2x128xbf16, #tpu.memory_space<vmem>>, vector<1x2x128xbf16>
    %268 = vector.shape_cast %267 : vector<1x2x128xbf16> to vector<2x128xbf16>
    %269 = vector.shape_cast %265 : vector<2x128xbf16> to vector<1x2x128xbf16>
    tpu.vector_store %arg4[%266, %c0_60, %c0_61], %269 {strides = array<i32>} : memref<8x2x128xbf16, #tpu.memory_space<vmem>>, vector<1x2x128xbf16>,
    %c8_i32 = arith.constant 8 : i32
    %c0_62 = arith.constant 0 : index
    %c0_63 = arith.constant 0 : index
    %270 = vector.load %arg5[%c0_62, %c0_63] : memref<2x128xf32, #tpu.memory_space<vmem>>, vector<2x128xf32>
    tpu.vector_store %arg5[%c0_62, %c0_63], %264 {strides = array<i32>} : memref<2x128xf32, #tpu.memory_space<vmem>>, vector<2x128xf32>,
    %c0_64 = arith.constant 0 : index
    %c0_65 = arith.constant 0 : index
    %271 = vector.load %arg6[%c0_64, %c0_65] : memref<2x128xf32, #tpu.memory_space<vmem>>, vector<2x128xf32>
    tpu.vector_store %arg6[%c0_64, %c0_65], %262 {strides = array<i32>} : memref<2x128xf32, #tpu.memory_space<vmem>>, vector<2x128xf32>,
    return
  }
  func.func @transform_0(%arg0: i32, %arg1: i32) -> (i32, i32, i32) {
    %c0_i32 = arith.constant 0 : i32
    %c0_i32_0 = arith.constant 0 : i32
    return %arg1, %arg0, %c0_i32 : i32, i32, i32
  }
  func.func @transform_1(%arg0: i32, %arg1: i32) -> (i32, i32) {
    %c0_i32 = arith.constant 0 : i32
    %c0_i32_0 = arith.constant 0 : i32
    %c0_i32_1 = arith.constant 0 : i32
    return %c0_i32, %c0_i32_0 : i32, i32
  }
  func.func @transform_2(%arg0: i32, %arg1: i32) -> (i32, i32, i32) {
    %c0_i32 = arith.constant 0 : i32
    %c0_i32_0 = arith.constant 0 : i32
    return %arg1, %arg0, %c0_i32 : i32, i32, i32
  }
}

module attributes {stable_mosaic.version = 11 : i64} {
  func.func @_matmul_bias_kernel(%arg0: i32, %arg1: i32, %arg2: i32, %arg3: memref<16x128xbf16, #tpu.memory_space<vmem>>, %arg4: memref<128x128xbf16, #tpu.memory_space<vmem>>, %arg5: memref<1x128xf32, #tpu.memory_space<vmem>>, %arg6: memref<16x128xf32, #tpu.memory_space<vmem>>, %arg7: memref<16x128xf32, #tpu.memory_space<vmem>>) attributes {dimension_semantics = [#tpu.dimension_semantics<parallel>, #tpu.dimension_semantics<parallel>, #tpu.dimension_semantics<arbitrary>], iteration_bounds = array<i64: 1, 1, 1>, scalar_prefetch = 0 : i64, scratch_operands = 1 : i64, tpu.core_type = #tpu.core_type<tc>, window_params = [{transform_indices = @transform_0, window_bounds = array<i64: 16, 128>}, {transform_indices = @transform_1, window_bounds = array<i64: 128, 128>}, {transform_indices = @transform_2, window_bounds = array<i64: 1, 128>}, {transform_indices = @transform_3, window_bounds = array<i64: 16, 128>}]} {
    %c0_i32 = arith.constant 0 : i32
    %0 = arith.cmpi eq, %arg2, %c0_i32 : i32
    %1 = arith.extui %0 : i1 to i32
    %c0_i32_0 = arith.constant 0 : i32
    %2 = arith.cmpi ne, %1, %c0_i32_0 : i32
    scf.if %2 {
      %cst_10 = arith.constant 0.000000e+00 : f32
      %12 = vector.broadcast %cst_10 : f32 to vector<16x128xf32>
      %c0_11 = arith.constant 0 : index
      %c0_12 = arith.constant 0 : index
      %13 = vector.load %arg7[%c0_11, %c0_12] : memref<16x128xf32, #tpu.memory_space<vmem>>, vector<16x128xf32>
      tpu.vector_store %arg7[%c0_11, %c0_12], %12 {strides = array<i32>} : memref<16x128xf32, #tpu.memory_space<vmem>>, vector<16x128xf32>,
    } else {
    }
    %c0 = arith.constant 0 : index
    %c0_1 = arith.constant 0 : index
    %3 = vector.load %arg7[%c0, %c0_1] : memref<16x128xf32, #tpu.memory_space<vmem>>, vector<16x128xf32>
    %c0_2 = arith.constant 0 : index
    %c0_3 = arith.constant 0 : index
    %4 = vector.load %arg3[%c0_2, %c0_3] : memref<16x128xbf16, #tpu.memory_space<vmem>>, vector<16x128xbf16>
    %c0_4 = arith.constant 0 : index
    %c0_5 = arith.constant 0 : index
    %5 = vector.load %arg4[%c0_4, %c0_5] : memref<128x128xbf16, #tpu.memory_space<vmem>>, vector<128x128xbf16>
    %cst = arith.constant dense<0.000000e+00> : vector<16x128xf32>
    %6 = tpu.matmul %4, %5, %cst {dimension_numbers = #tpu.dot_dimension_numbers<[1], [0], [0], [1], [0, 0, 1, 1], [], []>} : vector<16x128xbf16>, vector<128x128xbf16>, vector<16x128xf32> -> vector<16x128xf32>
    %7 = arith.addf %3, %6 : vector<16x128xf32>
    %c0_6 = arith.constant 0 : index
    %c0_7 = arith.constant 0 : index
    %8 = vector.load %arg7[%c0_6, %c0_7] : memref<16x128xf32, #tpu.memory_space<vmem>>, vector<16x128xf32>
    tpu.vector_store %arg7[%c0_6, %c0_7], %7 {strides = array<i32>} : memref<16x128xf32, #tpu.memory_space<vmem>>, vector<16x128xf32>,
    %c0_i32_8 = arith.constant 0 : i32
    %9 = arith.cmpi eq, %arg2, %c0_i32_8 : i32
    %10 = arith.extui %9 : i1 to i32
    %c0_i32_9 = arith.constant 0 : i32
    %11 = arith.cmpi ne, %10, %c0_i32_9 : i32
    scf.if %11 {
      %c0_10 = arith.constant 0 : index
      %c0_11 = arith.constant 0 : index
      %12 = vector.load %arg7[%c0_10, %c0_11] : memref<16x128xf32, #tpu.memory_space<vmem>>, vector<16x128xf32>
      %c0_12 = arith.constant 0 : index
      %c0_13 = arith.constant 0 : index
      %13 = vector.load %arg5[%c0_12, %c0_13] : memref<1x128xf32, #tpu.memory_space<vmem>>, vector<1x128xf32>
      %14 = vector.broadcast %13 : vector<1x128xf32> to vector<16x128xf32>
      %15 = arith.addf %12, %14 : vector<16x128xf32>
      %c0_14 = arith.constant 0 : index
      %c0_15 = arith.constant 0 : index
      %16 = vector.load %arg6[%c0_14, %c0_15] : memref<16x128xf32, #tpu.memory_space<vmem>>, vector<16x128xf32>
      tpu.vector_store %arg6[%c0_14, %c0_15], %15 {strides = array<i32>} : memref<16x128xf32, #tpu.memory_space<vmem>>, vector<16x128xf32>,
    } else {
    }
    return
  }
  func.func @transform_0(%arg0: i32, %arg1: i32, %arg2: i32) -> (i32, i32) {
    %c0_i32 = arith.constant 0 : i32
    return %arg0, %arg2 : i32, i32
  }
  func.func @transform_1(%arg0: i32, %arg1: i32, %arg2: i32) -> (i32, i32) {
    %c0_i32 = arith.constant 0 : i32
    return %arg2, %arg1 : i32, i32
  }
  func.func @transform_2(%arg0: i32, %arg1: i32, %arg2: i32) -> (i32, i32) {
    %c0_i32 = arith.constant 0 : i32
    %c0_i32_0 = arith.constant 0 : i32
    return %c0_i32, %arg1 : i32, i32
  }
  func.func @transform_3(%arg0: i32, %arg1: i32, %arg2: i32) -> (i32, i32) {
    %c0_i32 = arith.constant 0 : i32
    return %arg0, %arg1 : i32, i32
  }
}

</mosaic_0001>

<llo_original>
// kernel: neural_language_model_forward.3
$region0: #{neural_language_model_forward.3}
  #allocation0 [shape = 'u32[]', space=smem, size = 0x4, offset = 0x4, fixed_abs, tag = 'smem constant byte address 0x4 - core index']
  #allocation1 [shape = 'u32[144,128]{1,0:T(1,128)}', space=vmem, size = 0x12000, scoped, tag = 'internal scratch']
  #allocation2 [shape = 'f32[16,512]{1,0:T(8,128)}', space=vmem, size = 0x8000, scoped, tag = 'scratch operand']
  %s0 = inlined_call_operand.vmem [shape: bf16[16,32], index: 0, kind: input, shape index: {}]
  %s1 = inlined_call_operand.vmem [shape: bf16[32,512], index: 1, kind: input, shape index: {}]
  %s2 = inlined_call_operand.vmem [shape: f32[1,512], index: 2, kind: input, shape index: {}]
  %s3 = inlined_call_operand.vmem [shape: bf16[16,512], index: 3, kind: output, shape index: {}]
  %s4 = sld [smem:[#allocation0]]
  $region30: #{neural_language_model_forward.3} parent=0
    _
  %s6 = ssub.s32 1, %s4
  %s7 = scalar_select 0, %s6, %s4
  // Predicated region
  $region2: #{neural_language_model_forward.3} parent=0 // pred_check
    _
  $region3: #{neural_language_model_forward.3} parent=0 // pred_check_branch
    %9 = sbr.rel (0) target = $region5
  $region4: #{neural_language_model_forward.3} parent=0 // pred_region
    _
  $region5: #{neural_language_model_forward.3} parent=0 // pred_fallthru
    _
  // Predicated region
  $region6: #{neural_language_model_forward.3} parent=0 // pred_check
    _
  $region7: #{neural_language_model_forward.3} parent=0 // pred_check_branch
    %11 = sbr.rel (0) target = $region9
  $region8: #{neural_language_model_forward.3} parent=0 // pred_region
    _
  $region9: #{neural_language_model_forward.3} parent=0 // pred_fallthru
    _
  // Predicated region
  $region10: #{neural_language_model_forward.3} parent=0 // pred_check
    _
  $region11: #{neural_language_model_forward.3} parent=0 // pred_check_branch
    %13 = sbr.rel (0) target = $region13
  $region12: #{neural_language_model_forward.3} parent=0 // pred_region
    _
  $region13: #{neural_language_model_forward.3} parent=0 // pred_fallthru
    _
  %p15 = scmp.eq.s32.totalorder 0, 0
  // Predicated region
  $region14: #{neural_language_model_forward.3} parent=0 // pred_check
    %p16 = pneg %p15
  $region15: #{neural_language_model_forward.3} parent=0 // pred_check_branch
    %18 = sbr.rel (%p16) target = $region17
  $region16: #{neural_language_model_forward.3} parent=0 // pred_region
    %19 = vst [vmem:[#allocation2] sm:$0xff] 0.0
    %20 = vst [vmem:[#allocation2 + $0x8] sm:$0xff] 0.0
    %21 = vst [vmem:[#allocation2 + $0x10] sm:$0xff] 0.0
    %22 = vst [vmem:[#allocation2 + $0x18] sm:$0xff] 0.0
    %23 = vst [vmem:[#allocation2 + $0x20] sm:$0xff] 0.0
    %24 = vst [vmem:[#allocation2 + $0x28] sm:$0xff] 0.0
    %25 = vst [vmem:[#allocation2 + $0x30] sm:$0xff] 0.0
    %26 = vst [vmem:[#allocation2 + $0x38] sm:$0xff] 0.0
  $region17: #{neural_language_model_forward.3} parent=0 // pred_fallthru
    _
  %v27 = vld [vmem:[#allocation2] sm:$0xff]
  %v28 = vld [vmem:[#allocation2 + $0x8] sm:$0xff]
  %v29 = vld [vmem:[#allocation2 + $0x10] sm:$0xff]
  %v30 = vld [vmem:[#allocation2 + $0x18] sm:$0xff]
  %v31 = vld [vmem:[#allocation2 + $0x20] sm:$0xff]
  %v32 = vld [vmem:[#allocation2 + $0x28] sm:$0xff]
  %v33 = vld [vmem:[#allocation2 + $0x30] sm:$0xff]
  %v34 = vld [vmem:[#allocation2 + $0x38] sm:$0xff]
  %v35 = vld [vmem:[%s0] sm:$0xf]
  %v36 = vld [vmem:[%s0 + $0x4] sm:$0xf]
  %v37 = vld [vmem:[%s1] sm:$0xff]
  %v38 = vld [vmem:[%s1 + $0x8] sm:$0xff]
  %v39 = vld [vmem:[%s1 + $0x10] sm:$0xff]
  %v40 = vld [vmem:[%s1 + $0x18] sm:$0xff]
  %v41 = vld [vmem:[%s1 + $0x20] sm:$0xff]
  %v42 = vld [vmem:[%s1 + $0x28] sm:$0xff]
  %v43 = vld [vmem:[%s1 + $0x30] sm:$0xff]
  %v44 = vld [vmem:[%s1 + $0x38] sm:$0xff]
  %v47 = vunpack.c.l.b16 %v35
  %v48 = vunpack.c.l.b16 %v36
  %v49 = vpack.c.b16 %v48, %v47
  %v58 = vunpack.c.l.b16 %v37
  %v59 = vunpack.c.h.b16 %v37
  %v60 = vunpack.c.l.b16 %v38
  %v61 = vunpack.c.h.b16 %v38
  %v62 = vunpack.c.l.b16 %v39
  %v63 = vunpack.c.h.b16 %v39
  %v64 = vunpack.c.l.b16 %v40
  %v65 = vunpack.c.h.b16 %v40
  %v66 = vunpack.c.l.b16 %v41
  %v67 = vunpack.c.h.b16 %v41
  %v68 = vunpack.c.l.b16 %v42
  %v69 = vunpack.c.h.b16 %v42
  %v70 = vunpack.c.l.b16 %v43
  %v71 = vunpack.c.h.b16 %v43
  %v72 = vunpack.c.l.b16 %v44
  %v73 = vunpack.c.h.b16 %v44
  %v74 = vpack.c.b16 %v62, %v58
  %v75 = vpack.c.b16 %v63, %v59
  %v76 = vpack.c.b16 %v64, %v60
  %v77 = vpack.c.b16 %v65, %v61
  %v78 = vpack.c.b16 %v70, %v66
  %v79 = vpack.c.b16 %v71, %v67
  %v80 = vpack.c.b16 %v72, %v68
  %v81 = vpack.c.b16 %v73, %v69
  %vm90 = vcmask 261120
  %v92 = vsel %vm90, %v49, 0
  %94 = vmatprep.subr.bf16.mxu0 0
  %95 = vmatpush1.bf16.msra.mxu0 0
  %96 = vmatprep.subr.bf16.mxu0 0
  %97 = vmatpush1.bf16.msra.mxu0 0
  %98 = vmatprep.subr.bf16.mxu0 0
  %99 = vmatpush1.bf16.msra.mxu0 0
  %100 = vmatprep.subr.bf16.mxu0 0
  %101 = vmatpush1.bf16.msra.mxu0 0
  %102 = vmatprep.subr.bf16.mxu0 0
  %103 = vmatpush1.bf16.msra.mxu0 0
  %104 = vmatprep.subr.bf16.mxu0 0
  %105 = vmatpush1.bf16.msra.mxu0 0
  %106 = vmatprep.subr.bf16.mxu0 %v79
  %107 = vmatpush1.bf16.msra.mxu0 %v78
  %108 = vmatprep.subr.bf16.mxu0 %v75
  %109 = vmatpush1.bf16.msra.mxu0 %v74
  %110 = vmatprep.subr.bf16.mxu0 0
  %111 = vmatpush2.bf16.msra.mxu0 0
  %112 = vmatprep.subr.bf16.mxu0 0
  %113 = vmatpush2.bf16.msra.mxu0 0
  %114 = vmatprep.subr.bf16.mxu0 0
  %115 = vmatpush2.bf16.msra.mxu0 0
  %116 = vmatprep.subr.bf16.mxu0 0
  %117 = vmatpush2.bf16.msra.mxu0 0
  %118 = vmatprep.subr.bf16.mxu0 0
  %119 = vmatpush2.bf16.msra.mxu0 0
  %120 = vmatprep.subr.bf16.mxu0 0
  %121 = vmatpush2.bf16.msra.mxu0 0
  %122 = vmatprep.subr.bf16.mxu0 0
  %123 = vmatpush2.bf16.msra.mxu0 0
  %124 = vmatprep.subr.bf16.mxu0 0
  %125 = vmatpush2.bf16.msra.mxu0 0
  %126 = vmatprep.mubr.bf16.mxu0 0
  %127 = vmatmul.mubr.bf16.gmra.mxu0 %v92
  %v128 = vpop.f32.mrf.mxu0
  %v129 = vadd.f32 0.0, %v128
  %v130 = vpop.f32.mrf.mxu0
  %v131 = vadd.f32 0.0, %v130
  %v132 = vpop.f32.mrf.mxu0
  %v133 = vadd.f32 0.0, %v132
  %v134 = vpop.f32.mrf.mxu0
  %v135 = vadd.f32 0.0, %v134
  %136 = vdwg.mxu0
  %137 = vmatprep.subr.bf16.mxu0 0
  %138 = vmatpush1.bf16.msra.mxu0 0
  %139 = vmatprep.subr.bf16.mxu0 0
  %140 = vmatpush1.bf16.msra.mxu0 0
  %141 = vmatprep.subr.bf16.mxu0 0
  %142 = vmatpush1.bf16.msra.mxu0 0
  %143 = vmatprep.subr.bf16.mxu0 0
  %144 = vmatpush1.bf16.msra.mxu0 0
  %145 = vmatprep.subr.bf16.mxu0 0
  %146 = vmatpush1.bf16.msra.mxu0 0
  %147 = vmatprep.subr.bf16.mxu0 0
  %148 = vmatpush1.bf16.msra.mxu0 0
  %149 = vmatprep.subr.bf16.mxu0 %v81
  %150 = vmatpush1.bf16.msra.mxu0 %v80
  %151 = vmatprep.subr.bf16.mxu0 %v77
  %152 = vmatpush1.bf16.msra.mxu0 %v76
  %153 = vmatprep.subr.bf16.mxu0 0
  %154 = vmatpush2.bf16.msra.mxu0 0
  %155 = vmatprep.subr.bf16.mxu0 0
  %156 = vmatpush2.bf16.msra.mxu0 0
  %157 = vmatprep.subr.bf16.mxu0 0
  %158 = vmatpush2.bf16.msra.mxu0 0
  %159 = vmatprep.subr.bf16.mxu0 0
  %160 = vmatpush2.bf16.msra.mxu0 0
  %161 = vmatprep.subr.bf16.mxu0 0
  %162 = vmatpush2.bf16.msra.mxu0 0
  %163 = vmatprep.subr.bf16.mxu0 0
  %164 = vmatpush2.bf16.msra.mxu0 0
  %165 = vmatprep.subr.bf16.mxu0 0
  %166 = vmatpush2.bf16.msra.mxu0 0
  %167 = vmatprep.subr.bf16.mxu0 0
  %168 = vmatpush2.bf16.msra.mxu0 0
  %169 = vmatprep.mubr.bf16.mxu0 0
  %170 = vmatmul.mubr.bf16.gmra.mxu0 %v92
  %v171 = vpop.f32.mrf.mxu0
  %v172 = vadd.f32 0.0, %v171
  %v173 = vpop.f32.mrf.mxu0
  %v174 = vadd.f32 0.0, %v173
  %v175 = vpop.f32.mrf.mxu0
  %v176 = vadd.f32 0.0, %v175
  %v177 = vpop.f32.mrf.mxu0
  %v178 = vadd.f32 0.0, %v177
  %179 = vdwg.mxu0
  %v180 = vadd.f32 %v27, %v129
  %v181 = vadd.f32 %v28, %v131
  %v182 = vadd.f32 %v29, %v172
  %v183 = vadd.f32 %v30, %v174
  %v184 = vadd.f32 %v31, %v133
  %v185 = vadd.f32 %v32, %v135
  %v186 = vadd.f32 %v33, %v176
  %v187 = vadd.f32 %v34, %v178
  %188 = vst [vmem:[#allocation2] sm:$0xff] %v180
  %189 = vst [vmem:[#allocation2 + $0x8] sm:$0xff] %v181
  %190 = vst [vmem:[#allocation2 + $0x10] sm:$0xff] %v182
  %191 = vst [vmem:[#allocation2 + $0x18] sm:$0xff] %v183
  %192 = vst [vmem:[#allocation2 + $0x20] sm:$0xff] %v184
  %193 = vst [vmem:[#allocation2 + $0x28] sm:$0xff] %v185
  %194 = vst [vmem:[#allocation2 + $0x30] sm:$0xff] %v186
  %195 = vst [vmem:[#allocation2 + $0x38] sm:$0xff] %v187
  // Predicated region
  $region18: #{neural_language_model_forward.3} parent=0 // pred_check
    %p196 = pneg %p15
  $region19: #{neural_language_model_forward.3} parent=0 // pred_check_branch
    %198 = sbr.rel (%p196) target = $region21
  $region20: #{neural_language_model_forward.3} parent=0 // pred_region
    %v199 = vld [vmem:[#allocation2] sm:$0xff]
    %v200 = vld [vmem:[#allocation2 + $0x8] sm:$0xff]
    %v201 = vld [vmem:[#allocation2 + $0x10] sm:$0xff]
    %v202 = vld [vmem:[#allocation2 + $0x18] sm:$0xff]
    %v203 = vld [vmem:[#allocation2 + $0x20] sm:$0xff]
    %v204 = vld [vmem:[#allocation2 + $0x28] sm:$0xff]
    %v205 = vld [vmem:[#allocation2 + $0x30] sm:$0xff]
    %v206 = vld [vmem:[#allocation2 + $0x38] sm:$0xff]
    %v207 = vld [vmem:[%s2] sm:$0xf]
    %v209 = vlaneseq
    %v210 = vshrl.u32 %v209, 7
    %v211 = vsub.s32 0, %v210
    %v212 = vrot.slane %v207, %v211
    %v213 = vlaneseq
    %v214 = vshrl.u32 %v213, 7
    %v215 = vsub.s32 1, %v214
    %v216 = vrot.slane %v207, %v215
    %v217 = vlaneseq
    %v218 = vshrl.u32 %v217, 7
    %v219 = vsub.s32 2, %v218
    %v220 = vrot.slane %v207, %v219
    %v221 = vlaneseq
    %v222 = vshrl.u32 %v221, 7
    %v223 = vsub.s32 3, %v222
    %v224 = vrot.slane %v207, %v223
    %v229 = vadd.f32 %v199, %v212
    %v230 = vadd.f32 %v200, %v216
    %v231 = vadd.f32 %v201, %v220
    %v232 = vadd.f32 %v202, %v224
    %v233 = vadd.f32 %v203, %v212
    %v234 = vadd.f32 %v204, %v216
    %v235 = vadd.f32 %v205, %v220
    %v236 = vadd.f32 %v206, %v224
    %v237 = vpack.c.bf16 %v233, %v229
    %v238 = vpack.c.bf16 %v234, %v230
    %v239 = vpack.c.bf16 %v235, %v231
    %v240 = vpack.c.bf16 %v236, %v232
    %v245 = vunpack.c.l.b16 %v237
    %v246 = vunpack.c.l.b16 %v238
    %v247 = vunpack.c.l.b16 %v239
    %v248 = vunpack.c.l.b16 %v240
    %v249 = vunpack.c.h.b16 %v237
    %v250 = vunpack.c.h.b16 %v238
    %v251 = vunpack.c.h.b16 %v239
    %v252 = vunpack.c.h.b16 %v240
    %v253 = vpack.c.b16 %v246, %v245
    %v254 = vpack.c.b16 %v248, %v247
    %v255 = vpack.c.b16 %v250, %v249
    %v256 = vpack.c.b16 %v252, %v251
    %261 = vst [vmem:[%s3] sm:$0xff] %v253
    %262 = vst [vmem:[%s3 + $0x8] sm:$0xff] %v254
    %263 = vst [vmem:[%s3 + $0x10] sm:$0xff] %v255
    %264 = vst [vmem:[%s3 + $0x18] sm:$0xff] %v256
  $region21: #{neural_language_model_forward.3} parent=0 // pred_fallthru
    _
  // Predicated region
  $region22: #{neural_language_model_forward.3} parent=0 // pred_check
    _
  $region23: #{neural_language_model_forward.3} parent=0 // pred_check_branch
    %266 = sbr.rel (0) target = $region25
  $region24: #{neural_language_model_forward.3} parent=0 // pred_region
    _
  $region25: #{neural_language_model_forward.3} parent=0 // pred_fallthru
    _
  // Predicated region
  $region26: #{neural_language_model_forward.3} parent=0 // pred_check
    _
  $region27: #{neural_language_model_forward.3} parent=0 // pred_check_branch
    %268 = sbr.rel (0) target = $region29
  $region28: #{neural_language_model_forward.3} parent=0 // pred_region
    _
  $region29: #{neural_language_model_forward.3} parent=0 // pred_fallthru
    _

// kernel: neural_language_model_forward.5
$region0: #{neural_language_model_forward.5}
  #allocation0 [shape = 'u32[]', space=smem, size = 0x4, offset = 0x4, fixed_abs, tag = 'smem constant byte address 0x4 - core index']
  #allocation1 [shape = 'u32[144,128]{1,0:T(1,128)}', space=vmem, size = 0x12000, scoped, tag = 'internal scratch']
  #allocation2 [shape = 'f32[16,128]{1,0:T(8,128)}', space=vmem, size = 0x2000, scoped, tag = 'scratch operand']
  %s0 = inlined_call_operand.vmem [shape: bf16[16,128], index: 0, kind: input, shape index: {}]
  %s1 = inlined_call_operand.vmem [shape: bf16[128,128], index: 1, kind: input, shape index: {}]
  %s2 = inlined_call_operand.vmem [shape: f32[1,128], index: 2, kind: input, shape index: {}]
  %s3 = inlined_call_operand.hbm [shape: f32[16,128], index: 3, kind: output, shape index: {}]
  %s4 = sld [smem:[#allocation0]]
  $region30: #{neural_language_model_forward.5} parent=0
    _
  %s6 = ssub.s32 1, %s4
  %s7 = scalar_select 0, %s6, %s4
  $region1: #{neural_language_model_forward.5} parent=0
    #allocation3 [shape = 'u8[8192]{0}', space=vmem, size = 0x2000, scoped, tag = 'output window, operand 0, single buffered']
    #allocation4 [shape = 's32[1]{0}', space=sflag, size = 0x4, scoped, tag = 'scoped memory for neural_language_model_forward.5']
    %8 = vsyncpa [#allocation4], 0
    // Predicated region
    $region2: #{neural_language_model_forward.5} parent=1 // pred_check
      _
    $region3: #{neural_language_model_forward.5} parent=1 // pred_check_branch
      %10 = sbr.rel (0) target = $region5
    $region4: #{neural_language_model_forward.5} parent=1 // pred_region
      _
    $region5: #{neural_language_model_forward.5} parent=1 // pred_fallthru
      _
    // Predicated region
    $region6: #{neural_language_model_forward.5} parent=1 // pred_check
      _
    $region7: #{neural_language_model_forward.5} parent=1 // pred_check_branch
      %12 = sbr.rel (0) target = $region9
    $region8: #{neural_language_model_forward.5} parent=1 // pred_region
      _
    $region9: #{neural_language_model_forward.5} parent=1 // pred_fallthru
      _
    // Predicated region
    $region10: #{neural_language_model_forward.5} parent=1 // pred_check
      _
    $region11: #{neural_language_model_forward.5} parent=1 // pred_check_branch
      %14 = sbr.rel (0) target = $region13
    $region12: #{neural_language_model_forward.5} parent=1 // pred_region
      _
    $region13: #{neural_language_model_forward.5} parent=1 // pred_fallthru
      _
    %p16 = scmp.eq.s32.totalorder 0, 0
    // Predicated region
    $region14: #{neural_language_model_forward.5} parent=1 // pred_check
      %p17 = pneg %p16
    $region15: #{neural_language_model_forward.5} parent=1 // pred_check_branch
      %19 = sbr.rel (%p17) target = $region17
    $region16: #{neural_language_model_forward.5} parent=1 // pred_region
      %20 = vst [vmem:[#allocation2] sm:$0xff] 0.0
      %21 = vst [vmem:[#allocation2 + $0x8] sm:$0xff] 0.0
    $region17: #{neural_language_model_forward.5} parent=1 // pred_fallthru
      _
    %v22 = vld [vmem:[#allocation2] sm:$0xff]
    %v23 = vld [vmem:[#allocation2 + $0x8] sm:$0xff]
    %v24 = vld [vmem:[%s0] sm:$0xf]
    %v25 = vld [vmem:[%s0 + $0x4] sm:$0xf]
    %v26 = vld [vmem:[%s1] sm:$0xf]
    %v27 = vld [vmem:[%s1 + $0x4] sm:$0xf]
    %v28 = vld [vmem:[%s1 + $0x8] sm:$0xf]
    %v29 = vld [vmem:[%s1 + $0xc] sm:$0xf]
    %v30 = vld [vmem:[%s1 + $0x10] sm:$0xf]
    %v31 = vld [vmem:[%s1 + $0x14] sm:$0xf]
    %v32 = vld [vmem:[%s1 + $0x18] sm:$0xf]
    %v33 = vld [vmem:[%s1 + $0x1c] sm:$0xf]
    %v34 = vld [vmem:[%s1 + $0x20] sm:$0xf]
    %v35 = vld [vmem:[%s1 + $0x24] sm:$0xf]
    %v36 = vld [vmem:[%s1 + $0x28] sm:$0xf]
    %v37 = vld [vmem:[%s1 + $0x2c] sm:$0xf]
    %v38 = vld [vmem:[%s1 + $0x30] sm:$0xf]
    %v39 = vld [vmem:[%s1 + $0x34] sm:$0xf]
    %v40 = vld [vmem:[%s1 + $0x38] sm:$0xf]
    %v41 = vld [vmem:[%s1 + $0x3c] sm:$0xf]
    %v44 = vunpack.c.l.b16 %v24
    %v45 = vunpack.c.l.b16 %v25
    %v46 = vpack.c.b16 %v45, %v44
    %v64 = vunpack.c.l.b16 %v26
    %v65 = vunpack.c.l.b16 %v27
    %v66 = vunpack.c.l.b16 %v28
    %v67 = vunpack.c.l.b16 %v29
    %v68 = vunpack.c.l.b16 %v30
    %v69 = vunpack.c.l.b16 %v31
    %v70 = vunpack.c.l.b16 %v32
    %v71 = vunpack.c.l.b16 %v33
    %v72 = vunpack.c.l.b16 %v34
    %v73 = vunpack.c.l.b16 %v35
    %v74 = vunpack.c.l.b16 %v36
    %v75 = vunpack.c.l.b16 %v37
    %v76 = vunpack.c.l.b16 %v38
    %v77 = vunpack.c.l.b16 %v39
    %v78 = vunpack.c.l.b16 %v40
    %v79 = vunpack.c.l.b16 %v41
    %v80 = vpack.c.b16 %v65, %v64
    %v81 = vpack.c.b16 %v67, %v66
    %v82 = vpack.c.b16 %v69, %v68
    %v83 = vpack.c.b16 %v71, %v70
    %v84 = vpack.c.b16 %v73, %v72
    %v85 = vpack.c.b16 %v75, %v74
    %v86 = vpack.c.b16 %v77, %v76
    %v87 = vpack.c.b16 %v79, %v78
    %96 = vmatprep.subr.bf16.mxu0 0
    %97 = vmatpush1.bf16.msra.mxu0 %v87
    %98 = vmatprep.subr.bf16.mxu0 0
    %99 = vmatpush1.bf16.msra.mxu0 %v86
    %100 = vmatprep.subr.bf16.mxu0 0
    %101 = vmatpush1.bf16.msra.mxu0 %v85
    %102 = vmatprep.subr.bf16.mxu0 0
    %103 = vmatpush1.bf16.msra.mxu0 %v84
    %104 = vmatprep.subr.bf16.mxu0 0
    %105 = vmatpush1.bf16.msra.mxu0 %v83
    %106 = vmatprep.subr.bf16.mxu0 0
    %107 = vmatpush1.bf16.msra.mxu0 %v82
    %108 = vmatprep.subr.bf16.mxu0 0
    %109 = vmatpush1.bf16.msra.mxu0 %v81
    %110 = vmatprep.subr.bf16.mxu0 0
    %111 = vmatpush1.bf16.msra.mxu0 %v80
    %112 = vmatprep.subr.bf16.mxu0 0
    %113 = vmatpush2.bf16.msra.mxu0 0
    %114 = vmatprep.subr.bf16.mxu0 0
    %115 = vmatpush2.bf16.msra.mxu0 0
    %116 = vmatprep.subr.bf16.mxu0 0
    %117 = vmatpush2.bf16.msra.mxu0 0
    %118 = vmatprep.subr.bf16.mxu0 0
    %119 = vmatpush2.bf16.msra.mxu0 0
    %120 = vmatprep.subr.bf16.mxu0 0
    %121 = vmatpush2.bf16.msra.mxu0 0
    %122 = vmatprep.subr.bf16.mxu0 0
    %123 = vmatpush2.bf16.msra.mxu0 0
    %124 = vmatprep.subr.bf16.mxu0 0
    %125 = vmatpush2.bf16.msra.mxu0 0
    %126 = vmatprep.subr.bf16.mxu0 0
    %127 = vmatpush2.bf16.msra.mxu0 0
    %128 = vmatprep.mubr.bf16.mxu0 0
    %129 = vmatmul.mubr.bf16.gmra.mxu0 %v46
    %v130 = vpop.f32.mrf.mxu0
    %v131 = vadd.f32 0.0, %v130
    %v132 = vpop.f32.mrf.mxu0
    %v133 = vpop.f32.mrf.mxu0
    %v134 = vadd.f32 0.0, %v133
    %v135 = vpop.f32.mrf.mxu0
    %136 = vdwg.mxu0
    %v137 = vadd.f32 %v22, %v131
    %v138 = vadd.f32 %v23, %v134
    %139 = vst [vmem:[#allocation2] sm:$0xff] %v137
    %140 = vst [vmem:[#allocation2 + $0x8] sm:$0xff] %v138
    // Predicated region
    $region18: #{neural_language_model_forward.5} parent=1 // pred_check
      %p141 = pneg %p16
    $region19: #{neural_language_model_forward.5} parent=1 // pred_check_branch
      %143 = sbr.rel (%p141) target = $region21
    $region20: #{neural_language_model_forward.5} parent=1 // pred_region
      %v144 = vld [vmem:[#allocation2] sm:$0xff]
      %v145 = vld [vmem:[#allocation2 + $0x8] sm:$0xff]
      %v146 = vld [vmem:[%s2] sm:$0x1]
      %v148 = vlaneseq
      %v149 = vshrl.u32 %v148, 7
      %v150 = vsub.s32 0, %v149
      %v151 = vrot.slane %v146, %v150
      %v153 = vadd.f32 %v144, %v151
      %v154 = vadd.f32 %v145, %v151
      %155 = vst [vmem:[#allocation3] sm:$0xff] %v153
      %156 = vst [vmem:[#allocation3 + $0x8] sm:$0xff] %v154
    $region21: #{neural_language_model_forward.5} parent=1 // pred_fallthru
      _
    // Predicated region
    $region22: #{neural_language_model_forward.5} parent=1 // pred_check
      _
    $region23: #{neural_language_model_forward.5} parent=1 // pred_check_branch
      %158 = sbr.rel (0) target = $region25
    $region24: #{neural_language_model_forward.5} parent=1 // pred_region
      %s160 = ssub.s32 256, 256
      %161 = vsyncadd [#allocation4], %s160
      %s162 = sshll.u32 [#allocation3], 4
      %s163 = int_to_ptr.vmem [resolvable:$true] %s162
      %168 = dma.vmem_to_hbm [thread:$0]  %s163, 256, %s3, [#allocation4], 128, 128, 8
    $region25: #{neural_language_model_forward.5} parent=1 // pred_fallthru
      _
    // Predicated region
    $region26: #{neural_language_model_forward.5} parent=1 // pred_check
      _
    $region27: #{neural_language_model_forward.5} parent=1 // pred_check_branch
      %170 = sbr.rel (0) target = $region29
    $region28: #{neural_language_model_forward.5} parent=1 // pred_region
      %171 = dma.done [#allocation4], 256
    $region29: #{neural_language_model_forward.5} parent=1 // pred_fallthru
      _
    %172 = vsyncpa [#allocation4], 1

// kernel: neural_language_model_forward.4
$region0: #{neural_language_model_forward.4}
  #allocation0 [shape = 'u32[]', space=smem, size = 0x4, offset = 0x4, fixed_abs, tag = 'smem constant byte address 0x4 - core index']
  #allocation1 [shape = 'u32[144,128]{1,0:T(1,128)}', space=vmem, size = 0x12000, scoped, tag = 'internal scratch']
  #allocation2 [shape = 'f32[2,128]{1,0:T(2,128)}', space=vmem, size = 0x400, scoped, tag = 'scratch operand']
  #allocation3 [shape = 'f32[2,128]{1,0:T(2,128)}', space=vmem, size = 0x400, scoped, tag = 'scratch operand']
  %s0 = inlined_call_operand.vmem [shape: bf16[8,2,512], index: 0, kind: input, shape index: {}]
  %s1 = inlined_call_operand.vmem [shape: bf16[128,512], index: 1, kind: input, shape index: {}]
  %s2 = inlined_call_operand.vmem [shape: bf16[8,2,128], index: 2, kind: output, shape index: {}]
  %s3 = sld [smem:[#allocation0]]
  $region22: #{neural_language_model_forward.4} parent=0
    _
  %s5 = ssub.s32 1, %s3
  %s6 = scalar_select 0, %s5, %s3
  // Predicated region
  $region2: #{neural_language_model_forward.4} parent=0 // pred_check
    _
  $region3: #{neural_language_model_forward.4} parent=0 // pred_check_branch
    %8 = sbr.rel (0) target = $region5
  $region4: #{neural_language_model_forward.4} parent=0 // pred_region
    _
  $region5: #{neural_language_model_forward.4} parent=0 // pred_fallthru
    _
  // Predicated region
  $region6: #{neural_language_model_forward.4} parent=0 // pred_check
    _
  $region7: #{neural_language_model_forward.4} parent=0 // pred_check_branch
    %10 = sbr.rel (0) target = $region9
  $region8: #{neural_language_model_forward.4} parent=0 // pred_region
    _
  $region9: #{neural_language_model_forward.4} parent=0 // pred_fallthru
    _
  %p12 = scmp.eq.s32.totalorder 0, 0
  // Predicated region
  $region10: #{neural_language_model_forward.4} parent=0 // pred_check
    %p13 = pneg %p12
  $region11: #{neural_language_model_forward.4} parent=0 // pred_check_branch
    %15 = sbr.rel (%p13) target = $region13
  $region12: #{neural_language_model_forward.4} parent=0 // pred_region
    %16 = vst [vmem:[#allocation2] sm:$0x3] 0.0
    %17 = vst [vmem:[#allocation3] sm:$0x3] 0.0
  $region13: #{neural_language_model_forward.4} parent=0 // pred_fallthru
    _
  %v18 = vld [vmem:[%s1] sm:$0xff]
  %v19 = vld [vmem:[%s1 + $0x8] sm:$0xff]
  %v20 = vld [vmem:[%s1 + $0x10] sm:$0xff]
  %v21 = vld [vmem:[%s1 + $0x18] sm:$0xff]
  %v22 = vld [vmem:[%s1 + $0x20] sm:$0xff]
  %v23 = vld [vmem:[%s1 + $0x28] sm:$0xff]
  %v24 = vld [vmem:[%s1 + $0x30] sm:$0xff]
  %v25 = vld [vmem:[%s1 + $0x38] sm:$0xff]
  %v26 = vld [vmem:[%s1 + $0x40] sm:$0xff]
  %v27 = vld [vmem:[%s1 + $0x48] sm:$0xff]
  %v28 = vld [vmem:[%s1 + $0x50] sm:$0xff]
  %v29 = vld [vmem:[%s1 + $0x58] sm:$0xff]
  %v30 = vld [vmem:[%s1 + $0x60] sm:$0xff]
  %v31 = vld [vmem:[%s1 + $0x68] sm:$0xff]
  %v32 = vld [vmem:[%s1 + $0x70] sm:$0xff]
  %v33 = vld [vmem:[%s1 + $0x78] sm:$0xff]
  %v34 = vld [vmem:[%s1 + $0x80] sm:$0xff]
  %v35 = vld [vmem:[%s1 + $0x88] sm:$0xff]
  %v36 = vld [vmem:[%s1 + $0x90] sm:$0xff]
  %v37 = vld [vmem:[%s1 + $0x98] sm:$0xff]
  %v38 = vld [vmem:[%s1 + $0xa0] sm:$0xff]
  %v39 = vld [vmem:[%s1 + $0xa8] sm:$0xff]
  %v40 = vld [vmem:[%s1 + $0xb0] sm:$0xff]
  %v41 = vld [vmem:[%s1 + $0xb8] sm:$0xff]
  %v42 = vld [vmem:[%s1 + $0xc0] sm:$0xff]
  %v43 = vld [vmem:[%s1 + $0xc8] sm:$0xff]
  %v44 = vld [vmem:[%s1 + $0xd0] sm:$0xff]
  %v45 = vld [vmem:[%s1 + $0xd8] sm:$0xff]
  %v46 = vld [vmem:[%s1 + $0xe0] sm:$0xff]
  %v47 = vld [vmem:[%s1 + $0xe8] sm:$0xff]
  %v48 = vld [vmem:[%s1 + $0xf0] sm:$0xff]
  %v49 = vld [vmem:[%s1 + $0xf8] sm:$0xff]
  %v50 = vld [vmem:[#allocation2] sm:$0x3]
  %v51 = vld [vmem:[#allocation3] sm:$0x3]
  %v52 = vld [vmem:[%s0] sm:$0xf]
  %v53 = vunpack.c.l.bf16 %v52
  %v54 = vpack.c.bf16 %v50, %v50
  %v87 = vunpack.c.l.b16 %v18
  %v88 = vunpack.c.h.b16 %v18
  %v89 = vunpack.c.l.b16 %v19
  %v90 = vunpack.c.h.b16 %v19
  %v91 = vunpack.c.l.b16 %v20
  %v92 = vunpack.c.h.b16 %v20
  %v93 = vunpack.c.l.b16 %v21
  %v94 = vunpack.c.h.b16 %v21
  %v95 = vunpack.c.l.b16 %v22
  %v96 = vunpack.c.h.b16 %v22
  %v97 = vunpack.c.l.b16 %v23
  %v98 = vunpack.c.h.b16 %v23
  %v99 = vunpack.c.l.b16 %v24
  %v100 = vunpack.c.h.b16 %v24
  %v101 = vunpack.c.l.b16 %v25
  %v102 = vunpack.c.h.b16 %v25
  %v103 = vunpack.c.l.b16 %v26
  %v104 = vunpack.c.h.b16 %v26
  %v105 = vunpack.c.l.b16 %v27
  %v106 = vunpack.c.h.b16 %v27
  %v107 = vunpack.c.l.b16 %v28
  %v108 = vunpack.c.h.b16 %v28
  %v109 = vunpack.c.l.b16 %v29
  %v110 = vunpack.c.h.b16 %v29
  %v111 = vunpack.c.l.b16 %v30
  %v112 = vunpack.c.h.b16 %v30
  %v113 = vunpack.c.l.b16 %v31
  %v114 = vunpack.c.h.b16 %v31
  %v115 = vunpack.c.l.b16 %v32
  %v116 = vunpack.c.h.b16 %v32
  %v117 = vunpack.c.l.b16 %v33
  %v118 = vunpack.c.h.b16 %v33
  %v119 = vunpack.c.l.b16 %v34
  %v120 = vunpack.c.h.b16 %v34
  %v121 = vunpack.c.l.b16 %v35
  %v122 = vunpack.c.h.b16 %v35
  %v123 = vunpack.c.l.b16 %v36
  %v124 = vunpack.c.h.b16 %v36
  %v125 = vunpack.c.l.b16 %v37
  %v126 = vunpack.c.h.b16 %v37
  %v127 = vunpack.c.l.b16 %v38
  %v128 = vunpack.c.h.b16 %v38
  %v129 = vunpack.c.l.b16 %v39
  %v130 = vunpack.c.h.b16 %v39
  %v131 = vunpack.c.l.b16 %v40
  %v132 = vunpack.c.h.b16 %v40
  %v133 = vunpack.c.l.b16 %v41
  %v134 = vunpack.c.h.b16 %v41
  %v135 = vunpack.c.l.b16 %v42
  %v136 = vunpack.c.h.b16 %v42
  %v137 = vunpack.c.l.b16 %v43
  %v138 = vunpack.c.h.b16 %v43
  %v139 = vunpack.c.l.b16 %v44
  %v140 = vunpack.c.h.b16 %v44
  %v141 = vunpack.c.l.b16 %v45
  %v142 = vunpack.c.h.b16 %v45
  %v143 = vunpack.c.l.b16 %v46
  %v144 = vunpack.c.h.b16 %v46
  %v145 = vunpack.c.l.b16 %v47
  %v146 = vunpack.c.h.b16 %v47
  %v147 = vunpack.c.l.b16 %v48
  %v148 = vunpack.c.h.b16 %v48
  %v149 = vunpack.c.l.b16 %v49
  %v150 = vunpack.c.h.b16 %v49
  %v151 = vpack.c.b16 %v91, %v87
  %v152 = vpack.c.b16 %v92, %v88
  %v153 = vpack.c.b16 %v93, %v89
  %v154 = vpack.c.b16 %v94, %v90
  %v155 = vpack.c.b16 %v99, %v95
  %v156 = vpack.c.b16 %v100, %v96
  %v157 = vpack.c.b16 %v101, %v97
  %v158 = vpack.c.b16 %v102, %v98
  %v159 = vpack.c.b16 %v107, %v103
  %v160 = vpack.c.b16 %v108, %v104
  %v161 = vpack.c.b16 %v109, %v105
  %v162 = vpack.c.b16 %v110, %v106
  %v163 = vpack.c.b16 %v115, %v111
  %v164 = vpack.c.b16 %v116, %v112
  %v165 = vpack.c.b16 %v117, %v113
  %v166 = vpack.c.b16 %v118, %v114
  %v167 = vpack.c.b16 %v123, %v119
  %v168 = vpack.c.b16 %v124, %v120
  %v169 = vpack.c.b16 %v125, %v121
  %v170 = vpack.c.b16 %v126, %v122
  %v171 = vpack.c.b16 %v131, %v127
  %v172 = vpack.c.b16 %v132, %v128
  %v173 = vpack.c.b16 %v133, %v129
  %v174 = vpack.c.b16 %v134, %v130
  %v175 = vpack.c.b16 %v139, %v135
  %v176 = vpack.c.b16 %v140, %v136
  %v177 = vpack.c.b16 %v141, %v137
  %v178 = vpack.c.b16 %v142, %v138
  %v179 = vpack.c.b16 %v147, %v143
  %v180 = vpack.c.b16 %v148, %v144
  %v181 = vpack.c.b16 %v149, %v145
  %v182 = vpack.c.b16 %v150, %v146
  %215 = vmatprep.subr.bf16.mxu0 %v180
  %216 = vmatpush1.bf16.msra.mxu0 %v179
  %217 = vmatprep.subr.bf16.mxu0 %v176
  %218 = vmatpush1.bf16.msra.mxu0 %v175
  %219 = vmatprep.subr.bf16.mxu0 %v172
  %220 = vmatpush1.bf16.msra.mxu0 %v171
  %221 = vmatprep.subr.bf16.mxu0 %v168
  %222 = vmatpush1.bf16.msra.mxu0 %v167
  %223 = vmatprep.subr.bf16.mxu0 %v164
  %224 = vmatpush1.bf16.msra.mxu0 %v163
  %225 = vmatprep.subr.bf16.mxu0 %v160
  %226 = vmatpush1.bf16.msra.mxu0 %v159
  %227 = vmatprep.subr.bf16.mxu0 %v156
  %228 = vmatpush1.bf16.msra.mxu0 %v155
  %229 = vmatprep.subr.bf16.mxu0 %v152
  %230 = vmatpush1.bf16.msra.mxu0 %v151
  %231 = vmatprep.subr.bf16.mxu0 0
  %232 = vmatpush2.bf16.msra.mxu0 0
  %233 = vmatprep.subr.bf16.mxu0 0
  %234 = vmatpush2.bf16.msra.mxu0 0
  %235 = vmatprep.subr.bf16.mxu0 0
  %236 = vmatpush2.bf16.msra.mxu0 0
  %237 = vmatprep.subr.bf16.mxu0 0
  %238 = vmatpush2.bf16.msra.mxu0 0
  %239 = vmatprep.subr.bf16.mxu0 0
  %240 = vmatpush2.bf16.msra.mxu0 0
  %241 = vmatprep.subr.bf16.mxu0 0
  %242 = vmatpush2.bf16.msra.mxu0 0
  %243 = vmatprep.subr.bf16.mxu0 0
  %244 = vmatpush2.bf16.msra.mxu0 0
  %245 = vmatprep.subr.bf16.mxu0 0
  %246 = vmatpush2.bf16.msra.mxu0 0
  %247 = vmatprep.mubr.bf16.mxu0 0
  %248 = vmatmul.mubr.bf16.gmra.mxu0 %v54
  %v249 = vpop.f32.mrf.mxu0
  %v250 = vadd.f32 0.0, %v249
  %v251 = vpop.f32.mrf.mxu0
  %v252 = vadd.f32 0.0, %v251
  %v253 = vpop.f32.mrf.mxu0
  %v254 = vpop.f32.mrf.mxu0
  %255 = vdwg.mxu0
  %256 = vmatprep.subr.bf16.mxu0 %v182
  %257 = vmatpush1.bf16.msra.mxu0 %v181
  %258 = vmatprep.subr.bf16.mxu0 %v178
  %259 = vmatpush1.bf16.msra.mxu0 %v177
  %260 = vmatprep.subr.bf16.mxu0 %v174
  %261 = vmatpush1.bf16.msra.mxu0 %v173
  %262 = vmatprep.subr.bf16.mxu0 %v170
  %263 = vmatpush1.bf16.msra.mxu0 %v169
  %264 = vmatprep.subr.bf16.mxu0 %v166
  %265 = vmatpush1.bf16.msra.mxu0 %v165
  %266 = vmatprep.subr.bf16.mxu0 %v162
  %267 = vmatpush1.bf16.msra.mxu0 %v161
  %268 = vmatprep.subr.bf16.mxu0 %v158
  %269 = vmatpush1.bf16.msra.mxu0 %v157
  %270 = vmatprep.subr.bf16.mxu0 %v154
  %271 = vmatpush1.bf16.msra.mxu0 %v153
  %272 = vmatprep.subr.bf16.mxu0 0
  %273 = vmatpush2.bf16.msra.mxu0 0
  %274 = vmatprep.subr.bf16.mxu0 0
  %275 = vmatpush2.bf16.msra.mxu0 0
  %276 = vmatprep.subr.bf16.mxu0 0
  %277 = vmatpush2.bf16.msra.mxu0 0
  %278 = vmatprep.subr.bf16.mxu0 0
  %279 = vmatpush2.bf16.msra.mxu0 0
  %280 = vmatprep.subr.bf16.mxu0 0
  %281 = vmatpush2.bf16.msra.mxu0 0
  %282 = vmatprep.subr.bf16.mxu0 0
  %283 = vmatpush2.bf16.msra.mxu0 0
  %284 = vmatprep.subr.bf16.mxu0 0
  %285 = vmatpush2.bf16.msra.mxu0 0
  %286 = vmatprep.subr.bf16.mxu0 0
  %287 = vmatpush2.bf16.msra.mxu0 0
  %288 = vmatprep.mubr.bf16.mxu0 0
  %289 = vmatmul.mubr.bf16.gmra.mxu0 %v54
  %v290 = vpop.f32.mrf.mxu0
  %v291 = vadd.f32 0.0, %v290
  %v292 = vpop.f32.mrf.mxu0
  %v293 = vadd.f32 0.0, %v292
  %v294 = vpop.f32.mrf.mxu0
  %v295 = vpop.f32.mrf.mxu0
  %296 = vdwg.mxu0
  %v301 = vcombine.low %v250, %v252
  %v302 = vcombine.low %v291, %v293
  %v304 = vunpack.c.l.s4 1983009808
  %v305 = vunpack.c.0.s8 %v304
  %v306 = vlaneseq
  %v307 = vshrl.u32 %v306, 7
  %v308 = vsub.s32 %v305, %v307
  %v309 = vrot.slane %v301, %v308
  %v311 = vunpack.c.l.s4 1983009808
  %v312 = vunpack.c.0.s8 %v311
  %v313 = vlaneseq
  %v314 = vshrl.u32 %v313, 7
  %v315 = vsub.s32 %v312, %v314
  %v316 = vrot.slane %v302, %v315
  %v317 = vcombine.low %v309, %v316
  %v319 = vadd.f32 %v53, %v317
  %v320 = vxor.u32 %v319, 2147483648
  %v321 = vmul.f32 %v320, 1.442695
  %v322 = vpow.pop %v321
  %v323 = vadd.f32 %v322, 1.0
  %v324 = vrcp.pop %v323
  %v325 = vmul.f32 1.0, %v324
  %v327 = vrot.slane %v319, 4
  %v329 = vtanh.pop %v327
  %v330 = vrot.slane %v319, 6
  %v332 = vxor.u32 %v330, 2147483648
  %v333 = vmul.f32 %v332, 1.442695
  %v334 = vpow.pop %v333
  %v335 = vadd.f32 %v334, 1.0
  %v336 = vrcp.pop %v335
  %v337 = vmul.f32 1.0, %v336
  %v339 = vrot.slane %v325, 2
  %v341 = vmul.f32 %v339, %v51
  %v342 = vmul.f32 %v325, %v329
  %v343 = vadd.f32 %v341, %v342
  %v344 = vtanh.pop %v343
  %v345 = vmul.f32 %v337, %v344
  %v346 = vpack.c.bf16 %v345, %v345
  %347 = vst [vmem:[%s2] sm:$0x1] %v346
  %s348 = scalar_lea.vmem %s0, 4
  %v349 = vld [vmem:[%s348] sm:$0xf]
  %v350 = vunpack.c.l.bf16 %v349
  %351 = vmatprep.subr.bf16.mxu0 %v180
  %352 = vmatpush1.bf16.msra.mxu0 %v179
  %353 = vmatprep.subr.bf16.mxu0 %v176
  %354 = vmatpush1.bf16.msra.mxu0 %v175
  %355 = vmatprep.subr.bf16.mxu0 %v172
  %356 = vmatpush1.bf16.msra.mxu0 %v171
  %357 = vmatprep.subr.bf16.mxu0 %v168
  %358 = vmatpush1.bf16.msra.mxu0 %v167
  %359 = vmatprep.subr.bf16.mxu0 %v164
  %360 = vmatpush1.bf16.msra.mxu0 %v163
  %361 = vmatprep.subr.bf16.mxu0 %v160
  %362 = vmatpush1.bf16.msra.mxu0 %v159
  %363 = vmatprep.subr.bf16.mxu0 %v156
  %364 = vmatpush1.bf16.msra.mxu0 %v155
  %365 = vmatprep.subr.bf16.mxu0 %v152
  %366 = vmatpush1.bf16.msra.mxu0 %v151
  %367 = vmatprep.subr.bf16.mxu0 0
  %368 = vmatpush2.bf16.msra.mxu0 0
  %369 = vmatprep.subr.bf16.mxu0 0
  %370 = vmatpush2.bf16.msra.mxu0 0
  %371 = vmatprep.subr.bf16.mxu0 0
  %372 = vmatpush2.bf16.msra.mxu0 0
  %373 = vmatprep.subr.bf16.mxu0 0
  %374 = vmatpush2.bf16.msra.mxu0 0
  %375 = vmatprep.subr.bf16.mxu0 0
  %376 = vmatpush2.bf16.msra.mxu0 0
  %377 = vmatprep.subr.bf16.mxu0 0
  %378 = vmatpush2.bf16.msra.mxu0 0
  %379 = vmatprep.subr.bf16.mxu0 0
  %380 = vmatpush2.bf16.msra.mxu0 0
  %381 = vmatprep.subr.bf16.mxu0 0
  %382 = vmatpush2.bf16.msra.mxu0 0
  %383 = vmatprep.mubr.bf16.mxu0 0
  %384 = vmatmul.mubr.bf16.gmra.mxu0 %v346
  %v385 = vpop.f32.mrf.mxu0
  %v386 = vadd.f32 0.0, %v385
  %v387 = vpop.f32.mrf.mxu0
  %v388 = vadd.f32 0.0, %v387
  %v389 = vpop.f32.mrf.mxu0
  %v390 = vpop.f32.mrf.mxu0
  %391 = vdwg.mxu0
  %392 = vmatprep.subr.bf16.mxu0 %v182
  %393 = vmatpush1.bf16.msra.mxu0 %v181
  %394 = vmatprep.subr.bf16.mxu0 %v178
  %395 = vmatpush1.bf16.msra.mxu0 %v177
  %396 = vmatprep.subr.bf16.mxu0 %v174
  %397 = vmatpush1.bf16.msra.mxu0 %v173
  %398 = vmatprep.subr.bf16.mxu0 %v170
  %399 = vmatpush1.bf16.msra.mxu0 %v169
  %400 = vmatprep.subr.bf16.mxu0 %v166
  %401 = vmatpush1.bf16.msra.mxu0 %v165
  %402 = vmatprep.subr.bf16.mxu0 %v162
  %403 = vmatpush1.bf16.msra.mxu0 %v161
  %404 = vmatprep.subr.bf16.mxu0 %v158
  %405 = vmatpush1.bf16.msra.mxu0 %v157
  %406 = vmatprep.subr.bf16.mxu0 %v154
  %407 = vmatpush1.bf16.msra.mxu0 %v153
  %408 = vmatprep.subr.bf16.mxu0 0
  %409 = vmatpush2.bf16.msra.mxu0 0
  %410 = vmatprep.subr.bf16.mxu0 0
  %411 = vmatpush2.bf16.msra.mxu0 0
  %412 = vmatprep.subr.bf16.mxu0 0
  %413 = vmatpush2.bf16.msra.mxu0 0
  %414 = vmatprep.subr.bf16.mxu0 0
  %415 = vmatpush2.bf16.msra.mxu0 0
  %416 = vmatprep.subr.bf16.mxu0 0
  %417 = vmatpush2.bf16.msra.mxu0 0
  %418 = vmatprep.subr.bf16.mxu0 0
  %419 = vmatpush2.bf16.msra.mxu0 0
  %420 = vmatprep.subr.bf16.mxu0 0
  %421 = vmatpush2.bf16.msra.mxu0 0
  %422 = vmatprep.subr.bf16.mxu0 0
  %423 = vmatpush2.bf16.msra.mxu0 0
  %424 = vmatprep.mubr.bf16.mxu0 0
  %425 = vmatmul.mubr.bf16.gmra.mxu0 %v346
  %v426 = vpop.f32.mrf.mxu0
  %v427 = vadd.f32 0.0, %v426
  %v428 = vpop.f32.mrf.mxu0
  %v429 = vadd.f32 0.0, %v428
  %v430 = vpop.f32.mrf.mxu0
  %v431 = vpop.f32.mrf.mxu0
  %432 = vdwg.mxu0
  %v437 = vcombine.low %v386, %v388
  %v438 = vcombine.low %v427, %v429
  %v440 = vunpack.c.l.s4 1983009808
  %v441 = vunpack.c.0.s8 %v440
  %v442 = vlaneseq
  %v443 = vshrl.u32 %v442, 7
  %v444 = vsub.s32 %v441, %v443
  %v445 = vrot.slane %v437, %v444
  %v447 = vunpack.c.l.s4 1983009808
  %v448 = vunpack.c.0.s8 %v447
  %v449 = vlaneseq
  %v450 = vshrl.u32 %v449, 7
  %v451 = vsub.s32 %v448, %v450
  %v452 = vrot.slane %v438, %v451
  %v453 = vcombine.low %v445, %v452
  %v455 = vadd.f32 %v350, %v453
  %v456 = vxor.u32 %v455, 2147483648
  %v457 = vmul.f32 %v456, 1.442695
  %v458 = vpow.pop %v457
  %v459 = vadd.f32 %v458, 1.0
  %v460 = vrcp.pop %v459
  %v461 = vmul.f32 1.0, %v460
  %v463 = vrot.slane %v455, 4
  %v465 = vtanh.pop %v463
  %v466 = vrot.slane %v455, 6
  %v468 = vxor.u32 %v466, 2147483648
  %v469 = vmul.f32 %v468, 1.442695
  %v470 = vpow.pop %v469
  %v471 = vadd.f32 %v470, 1.0
  %v472 = vrcp.pop %v471
  %v473 = vmul.f32 1.0, %v472
  %v475 = vrot.slane %v461, 2
  %v477 = vmul.f32 %v475, %v343
  %v478 = vmul.f32 %v461, %v465
  %v479 = vadd.f32 %v477, %v478
  %v480 = vtanh.pop %v479
  %v481 = vmul.f32 %v473, %v480
  %v482 = vpack.c.bf16 %v481, %v481
  %s483 = scalar_lea.vmem %s2, 1
  %484 = vst [vmem:[%s483] sm:$0x1] %v482
  %s485 = scalar_lea.vmem %s0, 8
  %v486 = vld [vmem:[%s485] sm:$0xf]
  %v487 = vunpack.c.l.bf16 %v486
  %488 = vmatprep.subr.bf16.mxu0 %v180
  %489 = vmatpush1.bf16.msra.mxu0 %v179
  %490 = vmatprep.subr.bf16.mxu0 %v176
  %491 = vmatpush1.bf16.msra.mxu0 %v175
  %492 = vmatprep.subr.bf16.mxu0 %v172
  %493 = vmatpush1.bf16.msra.mxu0 %v171
  %494 = vmatprep.subr.bf16.mxu0 %v168
  %495 = vmatpush1.bf16.msra.mxu0 %v167
  %496 = vmatprep.subr.bf16.mxu0 %v164
  %497 = vmatpush1.bf16.msra.mxu0 %v163
  %498 = vmatprep.subr.bf16.mxu0 %v160
  %499 = vmatpush1.bf16.msra.mxu0 %v159
  %500 = vmatprep.subr.bf16.mxu0 %v156
  %501 = vmatpush1.bf16.msra.mxu0 %v155
  %502 = vmatprep.subr.bf16.mxu0 %v152
  %503 = vmatpush1.bf16.msra.mxu0 %v151
  %504 = vmatprep.subr.bf16.mxu0 0
  %505 = vmatpush2.bf16.msra.mxu0 0
  %506 = vmatprep.subr.bf16.mxu0 0
  %507 = vmatpush2.bf16.msra.mxu0 0
  %508 = vmatprep.subr.bf16.mxu0 0
  %509 = vmatpush2.bf16.msra.mxu0 0
  %510 = vmatprep.subr.bf16.mxu0 0
  %511 = vmatpush2.bf16.msra.mxu0 0
  %512 = vmatprep.subr.bf16.mxu0 0
  %513 = vmatpush2.bf16.msra.mxu0 0
  %514 = vmatprep.subr.bf16.mxu0 0
  %515 = vmatpush2.bf16.msra.mxu0 0
  %516 = vmatprep.subr.bf16.mxu0 0
  %517 = vmatpush2.bf16.msra.mxu0 0
  %518 = vmatprep.subr.bf16.mxu0 0
  %519 = vmatpush2.bf16.msra.mxu0 0
  %520 = vmatprep.mubr.bf16.mxu0 0
  %521 = vmatmul.mubr.bf16.gmra.mxu0 %v482
  %v522 = vpop.f32.mrf.mxu0
  %v523 = vadd.f32 0.0, %v522
  %v524 = vpop.f32.mrf.mxu0
  %v525 = vadd.f32 0.0, %v524
  %v526 = vpop.f32.mrf.mxu0
  %v527 = vpop.f32.mrf.mxu0
  %528 = vdwg.mxu0
  %529 = vmatprep.subr.bf16.mxu0 %v182
  %530 = vmatpush1.bf16.msra.mxu0 %v181
  %531 = vmatprep.subr.bf16.mxu0 %v178
  %532 = vmatpush1.bf16.msra.mxu0 %v177
  %533 = vmatprep.subr.bf16.mxu0 %v174
  %534 = vmatpush1.bf16.msra.mxu0 %v173
  %535 = vmatprep.subr.bf16.mxu0 %v170
  %536 = vmatpush1.bf16.msra.mxu0 %v169
  %537 = vmatprep.subr.bf16.mxu0 %v166
  %538 = vmatpush1.bf16.msra.mxu0 %v165
  %539 = vmatprep.subr.bf16.mxu0 %v162
  %540 = vmatpush1.bf16.msra.mxu0 %v161
  %541 = vmatprep.subr.bf16.mxu0 %v158
  %542 = vmatpush1.bf16.msra.mxu0 %v157
  %543 = vmatprep.subr.bf16.mxu0 %v154
  %544 = vmatpush1.bf16.msra.mxu0 %v153
  %545 = vmatprep.subr.bf16.mxu0 0
  %546 = vmatpush2.bf16.msra.mxu0 0
  %547 = vmatprep.subr.bf16.mxu0 0
  %548 = vmatpush2.bf16.msra.mxu0 0
  %549 = vmatprep.subr.bf16.mxu0 0
  %550 = vmatpush2.bf16.msra.mxu0 0
  %551 = vmatprep.subr.bf16.mxu0 0
  %552 = vmatpush2.bf16.msra.mxu0 0
  %553 = vmatprep.subr.bf16.mxu0 0
  %554 = vmatpush2.bf16.msra.mxu0 0
  %555 = vmatprep.subr.bf16.mxu0 0
  %556 = vmatpush2.bf16.msra.mxu0 0
  %557 = vmatprep.subr.bf16.mxu0 0
  %558 = vmatpush2.bf16.msra.mxu0 0
  %559 = vmatprep.subr.bf16.mxu0 0
  %560 = vmatpush2.bf16.msra.mxu0 0
  %561 = vmatprep.mubr.bf16.mxu0 0
  %562 = vmatmul.mubr.bf16.gmra.mxu0 %v482
  %v563 = vpop.f32.mrf.mxu0
  %v564 = vadd.f32 0.0, %v563
  %v565 = vpop.f32.mrf.mxu0
  %v566 = vadd.f32 0.0, %v565
  %v567 = vpop.f32.mrf.mxu0
  %v568 = vpop.f32.mrf.mxu0
  %569 = vdwg.mxu0
  %v574 = vcombine.low %v523, %v525
  %v575 = vcombine.low %v564, %v566
  %v577 = vunpack.c.l.s4 1983009808
  %v578 = vunpack.c.0.s8 %v577
  %v579 = vlaneseq
  %v580 = vshrl.u32 %v579, 7
  %v581 = vsub.s32 %v578, %v580
  %v582 = vrot.slane %v574, %v581
  %v584 = vunpack.c.l.s4 1983009808
  %v585 = vunpack.c.0.s8 %v584
  %v586 = vlaneseq
  %v587 = vshrl.u32 %v586, 7
  %v588 = vsub.s32 %v585, %v587
  %v589 = vrot.slane %v575, %v588
  %v590 = vcombine.low %v582, %v589
  %v592 = vadd.f32 %v487, %v590
  %v593 = vxor.u32 %v592, 2147483648
  %v594 = vmul.f32 %v593, 1.442695
  %v595 = vpow.pop %v594
  %v596 = vadd.f32 %v595, 1.0
  %v597 = vrcp.pop %v596
  %v598 = vmul.f32 1.0, %v597
  %v600 = vrot.slane %v592, 4
  %v602 = vtanh.pop %v600
  %v603 = vrot.slane %v592, 6
  %v605 = vxor.u32 %v603, 2147483648
  %v606 = vmul.f32 %v605, 1.442695
  %v607 = vpow.pop %v606
  %v608 = vadd.f32 %v607, 1.0
  %v609 = vrcp.pop %v608
  %v610 = vmul.f32 1.0, %v609
  %v612 = vrot.slane %v598, 2
  %v614 = vmul.f32 %v612, %v479
  %v615 = vmul.f32 %v598, %v602
  %v616 = vadd.f32 %v614, %v615
  %v617 = vtanh.pop %v616
  %v618 = vmul.f32 %v610, %v617
  %v619 = vpack.c.bf16 %v618, %v618
  %s620 = scalar_lea.vmem %s2, 2
  %621 = vst [vmem:[%s620] sm:$0x1] %v619
  %s622 = scalar_lea.vmem %s0, 12
  %v623 = vld [vmem:[%s622] sm:$0xf]
  %v624 = vunpack.c.l.bf16 %v623
  %625 = vmatprep.subr.bf16.mxu0 %v180
  %626 = vmatpush1.bf16.msra.mxu0 %v179
  %627 = vmatprep.subr.bf16.mxu0 %v176
  %628 = vmatpush1.bf16.msra.mxu0 %v175
  %629 = vmatprep.subr.bf16.mxu0 %v172
  %630 = vmatpush1.bf16.msra.mxu0 %v171
  %631 = vmatprep.subr.bf16.mxu0 %v168
  %632 = vmatpush1.bf16.msra.mxu0 %v167
  %633 = vmatprep.subr.bf16.mxu0 %v164
  %634 = vmatpush1.bf16.msra.mxu0 %v163
  %635 = vmatprep.subr.bf16.mxu0 %v160
  %636 = vmatpush1.bf16.msra.mxu0 %v159
  %637 = vmatprep.subr.bf16.mxu0 %v156
  %638 = vmatpush1.bf16.msra.mxu0 %v155
  %639 = vmatprep.subr.bf16.mxu0 %v152
  %640 = vmatpush1.bf16.msra.mxu0 %v151
  %641 = vmatprep.subr.bf16.mxu0 0
  %642 = vmatpush2.bf16.msra.mxu0 0
  %643 = vmatprep.subr.bf16.mxu0 0
  %644 = vmatpush2.bf16.msra.mxu0 0
  %645 = vmatprep.subr.bf16.mxu0 0
  %646 = vmatpush2.bf16.msra.mxu0 0
  %647 = vmatprep.subr.bf16.mxu0 0
  %648 = vmatpush2.bf16.msra.mxu0 0
  %649 = vmatprep.subr.bf16.mxu0 0
  %650 = vmatpush2.bf16.msra.mxu0 0
  %651 = vmatprep.subr.bf16.mxu0 0
  %652 = vmatpush2.bf16.msra.mxu0 0
  %653 = vmatprep.subr.bf16.mxu0 0
  %654 = vmatpush2.bf16.msra.mxu0 0
  %655 = vmatprep.subr.bf16.mxu0 0
  %656 = vmatpush2.bf16.msra.mxu0 0
  %657 = vmatprep.mubr.bf16.mxu0 0
  %658 = vmatmul.mubr.bf16.gmra.mxu0 %v619
  %v659 = vpop.f32.mrf.mxu0
  %v660 = vadd.f32 0.0, %v659
  %v661 = vpop.f32.mrf.mxu0
  %v662 = vadd.f32 0.0, %v661
  %v663 = vpop.f32.mrf.mxu0
  %v664 = vpop.f32.mrf.mxu0
  %665 = vdwg.mxu0
  %666 = vmatprep.subr.bf16.mxu0 %v182
  %667 = vmatpush1.bf16.msra.mxu0 %v181
  %668 = vmatprep.subr.bf16.mxu0 %v178
  %669 = vmatpush1.bf16.msra.mxu0 %v177
  %670 = vmatprep.subr.bf16.mxu0 %v174
  %671 = vmatpush1.bf16.msra.mxu0 %v173
  %672 = vmatprep.subr.bf16.mxu0 %v170
  %673 = vmatpush1.bf16.msra.mxu0 %v169
  %674 = vmatprep.subr.bf16.mxu0 %v166
  %675 = vmatpush1.bf16.msra.mxu0 %v165
  %676 = vmatprep.subr.bf16.mxu0 %v162
  %677 = vmatpush1.bf16.msra.mxu0 %v161
  %678 = vmatprep.subr.bf16.mxu0 %v158
  %679 = vmatpush1.bf16.msra.mxu0 %v157
  %680 = vmatprep.subr.bf16.mxu0 %v154
  %681 = vmatpush1.bf16.msra.mxu0 %v153
  %682 = vmatprep.subr.bf16.mxu0 0
  %683 = vmatpush2.bf16.msra.mxu0 0
  %684 = vmatprep.subr.bf16.mxu0 0
  %685 = vmatpush2.bf16.msra.mxu0 0
  %686 = vmatprep.subr.bf16.mxu0 0
  %687 = vmatpush2.bf16.msra.mxu0 0
  %688 = vmatprep.subr.bf16.mxu0 0
  %689 = vmatpush2.bf16.msra.mxu0 0
  %690 = vmatprep.subr.bf16.mxu0 0
  %691 = vmatpush2.bf16.msra.mxu0 0
  %692 = vmatprep.subr.bf16.mxu0 0
  %693 = vmatpush2.bf16.msra.mxu0 0
  %694 = vmatprep.subr.bf16.mxu0 0
  %695 = vmatpush2.bf16.msra.mxu0 0
  %696 = vmatprep.subr.bf16.mxu0 0
  %697 = vmatpush2.bf16.msra.mxu0 0
  %698 = vmatprep.mubr.bf16.mxu0 0
  %699 = vmatmul.mubr.bf16.gmra.mxu0 %v619
  %v700 = vpop.f32.mrf.mxu0
  %v701 = vadd.f32 0.0, %v700
  %v702 = vpop.f32.mrf.mxu0
  %v703 = vadd.f32 0.0, %v702
  %v704 = vpop.f32.mrf.mxu0
  %v705 = vpop.f32.mrf.mxu0
  %706 = vdwg.mxu0
  %v711 = vcombine.low %v660, %v662
  %v712 = vcombine.low %v701, %v703
  %v714 = vunpack.c.l.s4 1983009808
  %v715 = vunpack.c.0.s8 %v714
  %v716 = vlaneseq
  %v717 = vshrl.u32 %v716, 7
  %v718 = vsub.s32 %v715, %v717
  %v719 = vrot.slane %v711, %v718
  %v721 = vunpack.c.l.s4 1983009808
  %v722 = vunpack.c.0.s8 %v721
  %v723 = vlaneseq
  %v724 = vshrl.u32 %v723, 7
  %v725 = vsub.s32 %v722, %v724
  %v726 = vrot.slane %v712, %v725
  %v727 = vcombine.low %v719, %v726
  %v729 = vadd.f32 %v624, %v727
  %v730 = vxor.u32 %v729, 2147483648
  %v731 = vmul.f32 %v730, 1.442695
  %v732 = vpow.pop %v731
  %v733 = vadd.f32 %v732, 1.0
  %v734 = vrcp.pop %v733
  %v735 = vmul.f32 1.0, %v734
  %v737 = vrot.slane %v729, 4
  %v739 = vtanh.pop %v737
  %v740 = vrot.slane %v729, 6
  %v742 = vxor.u32 %v740, 2147483648
  %v743 = vmul.f32 %v742, 1.442695
  %v744 = vpow.pop %v743
  %v745 = vadd.f32 %v744, 1.0
  %v746 = vrcp.pop %v745
  %v747 = vmul.f32 1.0, %v746
  %v749 = vrot.slane %v735, 2
  %v751 = vmul.f32 %v749, %v616
  %v752 = vmul.f32 %v735, %v739
  %v753 = vadd.f32 %v751, %v752
  %v754 = vtanh.pop %v753
  %v755 = vmul.f32 %v747, %v754
  %v756 = vpack.c.bf16 %v755, %v755
  %s757 = scalar_lea.vmem %s2, 3
  %758 = vst [vmem:[%s757] sm:$0x1] %v756
  %s759 = scalar_lea.vmem %s0, 16
  %v760 = vld [vmem:[%s759] sm:$0xf]
  %v761 = vunpack.c.l.bf16 %v760
  %762 = vmatprep.subr.bf16.mxu0 %v180
  %763 = vmatpush1.bf16.msra.mxu0 %v179
  %764 = vmatprep.subr.bf16.mxu0 %v176
  %765 = vmatpush1.bf16.msra.mxu0 %v175
  %766 = vmatprep.subr.bf16.mxu0 %v172
  %767 = vmatpush1.bf16.msra.mxu0 %v171
  %768 = vmatprep.subr.bf16.mxu0 %v168
  %769 = vmatpush1.bf16.msra.mxu0 %v167
  %770 = vmatprep.subr.bf16.mxu0 %v164
  %771 = vmatpush1.bf16.msra.mxu0 %v163
  %772 = vmatprep.subr.bf16.mxu0 %v160
  %773 = vmatpush1.bf16.msra.mxu0 %v159
  %774 = vmatprep.subr.bf16.mxu0 %v156
  %775 = vmatpush1.bf16.msra.mxu0 %v155
  %776 = vmatprep.subr.bf16.mxu0 %v152
  %777 = vmatpush1.bf16.msra.mxu0 %v151
  %778 = vmatprep.subr.bf16.mxu0 0
  %779 = vmatpush2.bf16.msra.mxu0 0
  %780 = vmatprep.subr.bf16.mxu0 0
  %781 = vmatpush2.bf16.msra.mxu0 0
  %782 = vmatprep.subr.bf16.mxu0 0
  %783 = vmatpush2.bf16.msra.mxu0 0
  %784 = vmatprep.subr.bf16.mxu0 0
  %785 = vmatpush2.bf16.msra.mxu0 0
  %786 = vmatprep.subr.bf16.mxu0 0
  %787 = vmatpush2.bf16.msra.mxu0 0
  %788 = vmatprep.subr.bf16.mxu0 0
  %789 = vmatpush2.bf16.msra.mxu0 0
  %790 = vmatprep.subr.bf16.mxu0 0
  %791 = vmatpush2.bf16.msra.mxu0 0
  %792 = vmatprep.subr.bf16.mxu0 0
  %793 = vmatpush2.bf16.msra.mxu0 0
  %794 = vmatprep.mubr.bf16.mxu0 0
  %795 = vmatmul.mubr.bf16.gmra.mxu0 %v756
  %v796 = vpop.f32.mrf.mxu0
  %v797 = vadd.f32 0.0, %v796
  %v798 = vpop.f32.mrf.mxu0
  %v799 = vadd.f32 0.0, %v798
  %v800 = vpop.f32.mrf.mxu0
  %v801 = vpop.f32.mrf.mxu0
  %802 = vdwg.mxu0
  %803 = vmatprep.subr.bf16.mxu0 %v182
  %804 = vmatpush1.bf16.msra.mxu0 %v181
  %805 = vmatprep.subr.bf16.mxu0 %v178
  %806 = vmatpush1.bf16.msra.mxu0 %v177
  %807 = vmatprep.subr.bf16.mxu0 %v174
  %808 = vmatpush1.bf16.msra.mxu0 %v173
  %809 = vmatprep.subr.bf16.mxu0 %v170
  %810 = vmatpush1.bf16.msra.mxu0 %v169
  %811 = vmatprep.subr.bf16.mxu0 %v166
  %812 = vmatpush1.bf16.msra.mxu0 %v165
  %813 = vmatprep.subr.bf16.mxu0 %v162
  %814 = vmatpush1.bf16.msra.mxu0 %v161
  %815 = vmatprep.subr.bf16.mxu0 %v158
  %816 = vmatpush1.bf16.msra.mxu0 %v157
  %817 = vmatprep.subr.bf16.mxu0 %v154
  %818 = vmatpush1.bf16.msra.mxu0 %v153
  %819 = vmatprep.subr.bf16.mxu0 0
  %820 = vmatpush2.bf16.msra.mxu0 0
  %821 = vmatprep.subr.bf16.mxu0 0
  %822 = vmatpush2.bf16.msra.mxu0 0
  %823 = vmatprep.subr.bf16.mxu0 0
  %824 = vmatpush2.bf16.msra.mxu0 0
  %825 = vmatprep.subr.bf16.mxu0 0
  %826 = vmatpush2.bf16.msra.mxu0 0
  %827 = vmatprep.subr.bf16.mxu0 0
  %828 = vmatpush2.bf16.msra.mxu0 0
  %829 = vmatprep.subr.bf16.mxu0 0
  %830 = vmatpush2.bf16.msra.mxu0 0
  %831 = vmatprep.subr.bf16.mxu0 0
  %832 = vmatpush2.bf16.msra.mxu0 0
  %833 = vmatprep.subr.bf16.mxu0 0
  %834 = vmatpush2.bf16.msra.mxu0 0
  %835 = vmatprep.mubr.bf16.mxu0 0
  %836 = vmatmul.mubr.bf16.gmra.mxu0 %v756
  %v837 = vpop.f32.mrf.mxu0
  %v838 = vadd.f32 0.0, %v837
  %v839 = vpop.f32.mrf.mxu0
  %v840 = vadd.f32 0.0, %v839
  %v841 = vpop.f32.mrf.mxu0
  %v842 = vpop.f32.mrf.mxu0
  %843 = vdwg.mxu0
  %v848 = vcombine.low %v797, %v799
  %v849 = vcombine.low %v838, %v840
  %v851 = vunpack.c.l.s4 1983009808
  %v852 = vunpack.c.0.s8 %v851
  %v853 = vlaneseq
  %v854 = vshrl.u32 %v853, 7
  %v855 = vsub.s32 %v852, %v854
  %v856 = vrot.slane %v848, %v855
  %v858 = vunpack.c.l.s4 1983009808
  %v859 = vunpack.c.0.s8 %v858
  %v860 = vlaneseq
  %v861 = vshrl.u32 %v860, 7
  %v862 = vsub.s32 %v859, %v861
  %v863 = vrot.slane %v849, %v862
  %v864 = vcombine.low %v856, %v863
  %v866 = vadd.f32 %v761, %v864
  %v867 = vxor.u32 %v866, 2147483648
  %v868 = vmul.f32 %v867, 1.442695
  %v869 = vpow.pop %v868
  %v870 = vadd.f32 %v869, 1.0
  %v871 = vrcp.pop %v870
  %v872 = vmul.f32 1.0, %v871
  %v874 = vrot.slane %v866, 4
  %v876 = vtanh.pop %v874
  %v877 = vrot.slane %v866, 6
  %v879 = vxor.u32 %v877, 2147483648
  %v880 = vmul.f32 %v879, 1.442695
  %v881 = vpow.pop %v880
  %v882 = vadd.f32 %v881, 1.0
  %v883 = vrcp.pop %v882
  %v884 = vmul.f32 1.0, %v883
  %v886 = vrot.slane %v872, 2
  %v888 = vmul.f32 %v886, %v753
  %v889 = vmul.f32 %v872, %v876
  %v890 = vadd.f32 %v888, %v889
  %v891 = vtanh.pop %v890
  %v892 = vmul.f32 %v884, %v891
  %v893 = vpack.c.bf16 %v892, %v892
  %s894 = scalar_lea.vmem %s2, 4
  %895 = vst [vmem:[%s894] sm:$0x1] %v893
  %s896 = scalar_lea.vmem %s0, 20
  %v897 = vld [vmem:[%s896] sm:$0xf]
  %v898 = vunpack.c.l.bf16 %v897
  %899 = vmatprep.subr.bf16.mxu0 %v180
  %900 = vmatpush1.bf16.msra.mxu0 %v179
  %901 = vmatprep.subr.bf16.mxu0 %v176
  %902 = vmatpush1.bf16.msra.mxu0 %v175
  %903 = vmatprep.subr.bf16.mxu0 %v172
  %904 = vmatpush1.bf16.msra.mxu0 %v171
  %905 = vmatprep.subr.bf16.mxu0 %v168
  %906 = vmatpush1.bf16.msra.mxu0 %v167
  %907 = vmatprep.subr.bf16.mxu0 %v164
  %908 = vmatpush1.bf16.msra.mxu0 %v163
  %909 = vmatprep.subr.bf16.mxu0 %v160
  %910 = vmatpush1.bf16.msra.mxu0 %v159
  %911 = vmatprep.subr.bf16.mxu0 %v156
  %912 = vmatpush1.bf16.msra.mxu0 %v155
  %913 = vmatprep.subr.bf16.mxu0 %v152
  %914 = vmatpush1.bf16.msra.mxu0 %v151
  %915 = vmatprep.subr.bf16.mxu0 0
  %916 = vmatpush2.bf16.msra.mxu0 0
  %917 = vmatprep.subr.bf16.mxu0 0
  %918 = vmatpush2.bf16.msra.mxu0 0
  %919 = vmatprep.subr.bf16.mxu0 0
  %920 = vmatpush2.bf16.msra.mxu0 0
  %921 = vmatprep.subr.bf16.mxu0 0
  %922 = vmatpush2.bf16.msra.mxu0 0
  %923 = vmatprep.subr.bf16.mxu0 0
  %924 = vmatpush2.bf16.msra.mxu0 0
  %925 = vmatprep.subr.bf16.mxu0 0
  %926 = vmatpush2.bf16.msra.mxu0 0
  %927 = vmatprep.subr.bf16.mxu0 0
  %928 = vmatpush2.bf16.msra.mxu0 0
  %929 = vmatprep.subr.bf16.mxu0 0
  %930 = vmatpush2.bf16.msra.mxu0 0
  %931 = vmatprep.mubr.bf16.mxu0 0
  %932 = vmatmul.mubr.bf16.gmra.mxu0 %v893
  %v933 = vpop.f32.mrf.mxu0
  %v934 = vadd.f32 0.0, %v933
  %v935 = vpop.f32.mrf.mxu0
  %v936 = vadd.f32 0.0, %v935
  %v937 = vpop.f32.mrf.mxu0
  %v938 = vpop.f32.mrf.mxu0
  %939 = vdwg.mxu0
  %940 = vmatprep.subr.bf16.mxu0 %v182
  %941 = vmatpush1.bf16.msra.mxu0 %v181
  %942 = vmatprep.subr.bf16.mxu0 %v178
  %943 = vmatpush1.bf16.msra.mxu0 %v177
  %944 = vmatprep.subr.bf16.mxu0 %v174
  %945 = vmatpush1.bf16.msra.mxu0 %v173
  %946 = vmatprep.subr.bf16.mxu0 %v170
  %947 = vmatpush1.bf16.msra.mxu0 %v169
  %948 = vmatprep.subr.bf16.mxu0 %v166
  %949 = vmatpush1.bf16.msra.mxu0 %v165
  %950 = vmatprep.subr.bf16.mxu0 %v162
  %951 = vmatpush1.bf16.msra.mxu0 %v161
  %952 = vmatprep.subr.bf16.mxu0 %v158
  %953 = vmatpush1.bf16.msra.mxu0 %v157
  %954 = vmatprep.subr.bf16.mxu0 %v154
  %955 = vmatpush1.bf16.msra.mxu0 %v153
  %956 = vmatprep.subr.bf16.mxu0 0
  %957 = vmatpush2.bf16.msra.mxu0 0
  %958 = vmatprep.subr.bf16.mxu0 0
  %959 = vmatpush2.bf16.msra.mxu0 0
  %960 = vmatprep.subr.bf16.mxu0 0
  %961 = vmatpush2.bf16.msra.mxu0 0
  %962 = vmatprep.subr.bf16.mxu0 0
  %963 = vmatpush2.bf16.msra.mxu0 0
  %964 = vmatprep.subr.bf16.mxu0 0
  %965 = vmatpush2.bf16.msra.mxu0 0
  %966 = vmatprep.subr.bf16.mxu0 0
  %967 = vmatpush2.bf16.msra.mxu0 0
  %968 = vmatprep.subr.bf16.mxu0 0
  %969 = vmatpush2.bf16.msra.mxu0 0
  %970 = vmatprep.subr.bf16.mxu0 0
  %971 = vmatpush2.bf16.msra.mxu0 0
  %972 = vmatprep.mubr.bf16.mxu0 0
  %973 = vmatmul.mubr.bf16.gmra.mxu0 %v893
  %v974 = vpop.f32.mrf.mxu0
  %v975 = vadd.f32 0.0, %v974
  %v976 = vpop.f32.mrf.mxu0
  %v977 = vadd.f32 0.0, %v976
  %v978 = vpop.f32.mrf.mxu0
  %v979 = vpop.f32.mrf.mxu0
  %980 = vdwg.mxu0
  %v985 = vcombine.low %v934, %v936
  %v986 = vcombine.low %v975, %v977
  %v988 = vunpack.c.l.s4 1983009808
  %v989 = vunpack.c.0.s8 %v988
  %v990 = vlaneseq
  %v991 = vshrl.u32 %v990, 7
  %v992 = vsub.s32 %v989, %v991
  %v993 = vrot.slane %v985, %v992
  %v995 = vunpack.c.l.s4 1983009808
  %v996 = vunpack.c.0.s8 %v995
  %v997 = vlaneseq
  %v998 = vshrl.u32 %v997, 7
  %v999 = vsub.s32 %v996, %v998
  %v1000 = vrot.slane %v986, %v999
  %v1001 = vcombine.low %v993, %v1000
  %v1003 = vadd.f32 %v898, %v1001
  %v1004 = vxor.u32 %v1003, 2147483648
  %v1005 = vmul.f32 %v1004, 1.442695
  %v1006 = vpow.pop %v1005
  %v1007 = vadd.f32 %v1006, 1.0
  %v1008 = vrcp.pop %v1007
  %v1009 = vmul.f32 1.0, %v1008
  %v1011 = vrot.slane %v1003, 4
  %v1013 = vtanh.pop %v1011
  %v1014 = vrot.slane %v1003, 6
  %v1016 = vxor.u32 %v1014, 2147483648
  %v1017 = vmul.f32 %v1016, 1.442695
  %v1018 = vpow.pop %v1017
  %v1019 = vadd.f32 %v1018, 1.0
  %v1020 = vrcp.pop %v1019
  %v1021 = vmul.f32 1.0, %v1020
  %v1023 = vrot.slane %v1009, 2
  %v1025 = vmul.f32 %v1023, %v890
  %v1026 = vmul.f32 %v1009, %v1013
  %v1027 = vadd.f32 %v1025, %v1026
  %v1028 = vtanh.pop %v1027
  %v1029 = vmul.f32 %v1021, %v1028
  %v1030 = vpack.c.bf16 %v1029, %v1029
  %s1031 = scalar_lea.vmem %s2, 5
  %1032 = vst [vmem:[%s1031] sm:$0x1] %v1030
  %s1033 = scalar_lea.vmem %s0, 24
  %v1034 = vld [vmem:[%s1033] sm:$0xf]
  %v1035 = vunpack.c.l.bf16 %v1034
  %1036 = vmatprep.subr.bf16.mxu0 %v180
  %1037 = vmatpush1.bf16.msra.mxu0 %v179
  %1038 = vmatprep.subr.bf16.mxu0 %v176
  %1039 = vmatpush1.bf16.msra.mxu0 %v175
  %1040 = vmatprep.subr.bf16.mxu0 %v172
  %1041 = vmatpush1.bf16.msra.mxu0 %v171
  %1042 = vmatprep.subr.bf16.mxu0 %v168
  %1043 = vmatpush1.bf16.msra.mxu0 %v167
  %1044 = vmatprep.subr.bf16.mxu0 %v164
  %1045 = vmatpush1.bf16.msra.mxu0 %v163
  %1046 = vmatprep.subr.bf16.mxu0 %v160
  %1047 = vmatpush1.bf16.msra.mxu0 %v159
  %1048 = vmatprep.subr.bf16.mxu0 %v156
  %1049 = vmatpush1.bf16.msra.mxu0 %v155
  %1050 = vmatprep.subr.bf16.mxu0 %v152
  %1051 = vmatpush1.bf16.msra.mxu0 %v151
  %1052 = vmatprep.subr.bf16.mxu0 0
  %1053 = vmatpush2.bf16.msra.mxu0 0
  %1054 = vmatprep.subr.bf16.mxu0 0
  %1055 = vmatpush2.bf16.msra.mxu0 0
  %1056 = vmatprep.subr.bf16.mxu0 0
  %1057 = vmatpush2.bf16.msra.mxu0 0
  %1058 = vmatprep.subr.bf16.mxu0 0
  %1059 = vmatpush2.bf16.msra.mxu0 0
  %1060 = vmatprep.subr.bf16.mxu0 0
  %1061 = vmatpush2.bf16.msra.mxu0 0
  %1062 = vmatprep.subr.bf16.mxu0 0
  %1063 = vmatpush2.bf16.msra.mxu0 0
  %1064 = vmatprep.subr.bf16.mxu0 0
  %1065 = vmatpush2.bf16.msra.mxu0 0
  %1066 = vmatprep.subr.bf16.mxu0 0
  %1067 = vmatpush2.bf16.msra.mxu0 0
  %1068 = vmatprep.mubr.bf16.mxu0 0
  %1069 = vmatmul.mubr.bf16.gmra.mxu0 %v1030
  %v1070 = vpop.f32.mrf.mxu0
  %v1071 = vadd.f32 0.0, %v1070
  %v1072 = vpop.f32.mrf.mxu0
  %v1073 = vadd.f32 0.0, %v1072
  %v1074 = vpop.f32.mrf.mxu0
  %v1075 = vpop.f32.mrf.mxu0
  %1076 = vdwg.mxu0
  %1077 = vmatprep.subr.bf16.mxu0 %v182
  %1078 = vmatpush1.bf16.msra.mxu0 %v181
  %1079 = vmatprep.subr.bf16.mxu0 %v178
  %1080 = vmatpush1.bf16.msra.mxu0 %v177
  %1081 = vmatprep.subr.bf16.mxu0 %v174
  %1082 = vmatpush1.bf16.msra.mxu0 %v173
  %1083 = vmatprep.subr.bf16.mxu0 %v170
  %1084 = vmatpush1.bf16.msra.mxu0 %v169
  %1085 = vmatprep.subr.bf16.mxu0 %v166
  %1086 = vmatpush1.bf16.msra.mxu0 %v165
  %1087 = vmatprep.subr.bf16.mxu0 %v162
  %1088 = vmatpush1.bf16.msra.mxu0 %v161
  %1089 = vmatprep.subr.bf16.mxu0 %v158
  %1090 = vmatpush1.bf16.msra.mxu0 %v157
  %1091 = vmatprep.subr.bf16.mxu0 %v154
  %1092 = vmatpush1.bf16.msra.mxu0 %v153
  %1093 = vmatprep.subr.bf16.mxu0 0
  %1094 = vmatpush2.bf16.msra.mxu0 0
  %1095 = vmatprep.subr.bf16.mxu0 0
  %1096 = vmatpush2.bf16.msra.mxu0 0
  %1097 = vmatprep.subr.bf16.mxu0 0
  %1098 = vmatpush2.bf16.msra.mxu0 0
  %1099 = vmatprep.subr.bf16.mxu0 0
  %1100 = vmatpush2.bf16.msra.mxu0 0
  %1101 = vmatprep.subr.bf16.mxu0 0
  %1102 = vmatpush2.bf16.msra.mxu0 0
  %1103 = vmatprep.subr.bf16.mxu0 0
  %1104 = vmatpush2.bf16.msra.mxu0 0
  %1105 = vmatprep.subr.bf16.mxu0 0
  %1106 = vmatpush2.bf16.msra.mxu0 0
  %1107 = vmatprep.subr.bf16.mxu0 0
  %1108 = vmatpush2.bf16.msra.mxu0 0
  %1109 = vmatprep.mubr.bf16.mxu0 0
  %1110 = vmatmul.mubr.bf16.gmra.mxu0 %v1030
  %v1111 = vpop.f32.mrf.mxu0
  %v1112 = vadd.f32 0.0, %v1111
  %v1113 = vpop.f32.mrf.mxu0
  %v1114 = vadd.f32 0.0, %v1113
  %v1115 = vpop.f32.mrf.mxu0
  %v1116 = vpop.f32.mrf.mxu0
  %1117 = vdwg.mxu0
  %v1122 = vcombine.low %v1071, %v1073
  %v1123 = vcombine.low %v1112, %v1114
  %v1125 = vunpack.c.l.s4 1983009808
  %v1126 = vunpack.c.0.s8 %v1125
  %v1127 = vlaneseq
  %v1128 = vshrl.u32 %v1127, 7
  %v1129 = vsub.s32 %v1126, %v1128
  %v1130 = vrot.slane %v1122, %v1129
  %v1132 = vunpack.c.l.s4 1983009808
  %v1133 = vunpack.c.0.s8 %v1132
  %v1134 = vlaneseq
  %v1135 = vshrl.u32 %v1134, 7
  %v1136 = vsub.s32 %v1133, %v1135
  %v1137 = vrot.slane %v1123, %v1136
  %v1138 = vcombine.low %v1130, %v1137
  %v1140 = vadd.f32 %v1035, %v1138
  %v1141 = vxor.u32 %v1140, 2147483648
  %v1142 = vmul.f32 %v1141, 1.442695
  %v1143 = vpow.pop %v1142
  %v1144 = vadd.f32 %v1143, 1.0
  %v1145 = vrcp.pop %v1144
  %v1146 = vmul.f32 1.0, %v1145
  %v1148 = vrot.slane %v1140, 4
  %v1150 = vtanh.pop %v1148
  %v1151 = vrot.slane %v1140, 6
  %v1153 = vxor.u32 %v1151, 2147483648
  %v1154 = vmul.f32 %v1153, 1.442695
  %v1155 = vpow.pop %v1154
  %v1156 = vadd.f32 %v1155, 1.0
  %v1157 = vrcp.pop %v1156
  %v1158 = vmul.f32 1.0, %v1157
  %v1160 = vrot.slane %v1146, 2
  %v1162 = vmul.f32 %v1160, %v1027
  %v1163 = vmul.f32 %v1146, %v1150
  %v1164 = vadd.f32 %v1162, %v1163
  %v1165 = vtanh.pop %v1164
  %v1166 = vmul.f32 %v1158, %v1165
  %v1167 = vpack.c.bf16 %v1166, %v1166
  %s1168 = scalar_lea.vmem %s2, 6
  %1169 = vst [vmem:[%s1168] sm:$0x1] %v1167
  %s1170 = scalar_lea.vmem %s0, 28
  %v1171 = vld [vmem:[%s1170] sm:$0xf]
  %v1172 = vunpack.c.l.bf16 %v1171
  %1173 = vmatprep.subr.bf16.mxu0 %v180
  %1174 = vmatpush1.bf16.msra.mxu0 %v179
  %1175 = vmatprep.subr.bf16.mxu0 %v176
  %1176 = vmatpush1.bf16.msra.mxu0 %v175
  %1177 = vmatprep.subr.bf16.mxu0 %v172
  %1178 = vmatpush1.bf16.msra.mxu0 %v171
  %1179 = vmatprep.subr.bf16.mxu0 %v168
  %1180 = vmatpush1.bf16.msra.mxu0 %v167
  %1181 = vmatprep.subr.bf16.mxu0 %v164
  %1182 = vmatpush1.bf16.msra.mxu0 %v163
  %1183 = vmatprep.subr.bf16.mxu0 %v160
  %1184 = vmatpush1.bf16.msra.mxu0 %v159
  %1185 = vmatprep.subr.bf16.mxu0 %v156
  %1186 = vmatpush1.bf16.msra.mxu0 %v155
  %1187 = vmatprep.subr.bf16.mxu0 %v152
  %1188 = vmatpush1.bf16.msra.mxu0 %v151
  %1189 = vmatprep.subr.bf16.mxu0 0
  %1190 = vmatpush2.bf16.msra.mxu0 0
  %1191 = vmatprep.subr.bf16.mxu0 0
  %1192 = vmatpush2.bf16.msra.mxu0 0
  %1193 = vmatprep.subr.bf16.mxu0 0
  %1194 = vmatpush2.bf16.msra.mxu0 0
  %1195 = vmatprep.subr.bf16.mxu0 0
  %1196 = vmatpush2.bf16.msra.mxu0 0
  %1197 = vmatprep.subr.bf16.mxu0 0
  %1198 = vmatpush2.bf16.msra.mxu0 0
  %1199 = vmatprep.subr.bf16.mxu0 0
  %1200 = vmatpush2.bf16.msra.mxu0 0
  %1201 = vmatprep.subr.bf16.mxu0 0
  %1202 = vmatpush2.bf16.msra.mxu0 0
  %1203 = vmatprep.subr.bf16.mxu0 0
  %1204 = vmatpush2.bf16.msra.mxu0 0
  %1205 = vmatprep.mubr.bf16.mxu0 0
  %1206 = vmatmul.mubr.bf16.gmra.mxu0 %v1167
  %v1207 = vpop.f32.mrf.mxu0
  %v1208 = vadd.f32 0.0, %v1207
  %v1209 = vpop.f32.mrf.mxu0
  %v1210 = vadd.f32 0.0, %v1209
  %v1211 = vpop.f32.mrf.mxu0
  %v1212 = vpop.f32.mrf.mxu0
  %1213 = vdwg.mxu0
  %1214 = vmatprep.subr.bf16.mxu0 %v182
  %1215 = vmatpush1.bf16.msra.mxu0 %v181
  %1216 = vmatprep.subr.bf16.mxu0 %v178
  %1217 = vmatpush1.bf16.msra.mxu0 %v177
  %1218 = vmatprep.subr.bf16.mxu0 %v174
  %1219 = vmatpush1.bf16.msra.mxu0 %v173
  %1220 = vmatprep.subr.bf16.mxu0 %v170
  %1221 = vmatpush1.bf16.msra.mxu0 %v169
  %1222 = vmatprep.subr.bf16.mxu0 %v166
  %1223 = vmatpush1.bf16.msra.mxu0 %v165
  %1224 = vmatprep.subr.bf16.mxu0 %v162
  %1225 = vmatpush1.bf16.msra.mxu0 %v161
  %1226 = vmatprep.subr.bf16.mxu0 %v158
  %1227 = vmatpush1.bf16.msra.mxu0 %v157
  %1228 = vmatprep.subr.bf16.mxu0 %v154
  %1229 = vmatpush1.bf16.msra.mxu0 %v153
  %1230 = vmatprep.subr.bf16.mxu0 0
  %1231 = vmatpush2.bf16.msra.mxu0 0
  %1232 = vmatprep.subr.bf16.mxu0 0
  %1233 = vmatpush2.bf16.msra.mxu0 0
  %1234 = vmatprep.subr.bf16.mxu0 0
  %1235 = vmatpush2.bf16.msra.mxu0 0
  %1236 = vmatprep.subr.bf16.mxu0 0
  %1237 = vmatpush2.bf16.msra.mxu0 0
  %1238 = vmatprep.subr.bf16.mxu0 0
  %1239 = vmatpush2.bf16.msra.mxu0 0
  %1240 = vmatprep.subr.bf16.mxu0 0
  %1241 = vmatpush2.bf16.msra.mxu0 0
  %1242 = vmatprep.subr.bf16.mxu0 0
  %1243 = vmatpush2.bf16.msra.mxu0 0
  %1244 = vmatprep.subr.bf16.mxu0 0
  %1245 = vmatpush2.bf16.msra.mxu0 0
  %1246 = vmatprep.mubr.bf16.mxu0 0
  %1247 = vmatmul.mubr.bf16.gmra.mxu0 %v1167
  %v1248 = vpop.f32.mrf.mxu0
  %v1249 = vadd.f32 0.0, %v1248
  %v1250 = vpop.f32.mrf.mxu0
  %v1251 = vadd.f32 0.0, %v1250
  %v1252 = vpop.f32.mrf.mxu0
  %v1253 = vpop.f32.mrf.mxu0
  %1254 = vdwg.mxu0
  %v1259 = vcombine.low %v1208, %v1210
  %v1260 = vcombine.low %v1249, %v1251
  %v1262 = vunpack.c.l.s4 1983009808
  %v1263 = vunpack.c.0.s8 %v1262
  %v1264 = vlaneseq
  %v1265 = vshrl.u32 %v1264, 7
  %v1266 = vsub.s32 %v1263, %v1265
  %v1267 = vrot.slane %v1259, %v1266
  %v1269 = vunpack.c.l.s4 1983009808
  %v1270 = vunpack.c.0.s8 %v1269
  %v1271 = vlaneseq
  %v1272 = vshrl.u32 %v1271, 7
  %v1273 = vsub.s32 %v1270, %v1272
  %v1274 = vrot.slane %v1260, %v1273
  %v1275 = vcombine.low %v1267, %v1274
  %v1277 = vadd.f32 %v1172, %v1275
  %v1278 = vxor.u32 %v1277, 2147483648
  %v1279 = vmul.f32 %v1278, 1.442695
  %v1280 = vpow.pop %v1279
  %v1281 = vadd.f32 %v1280, 1.0
  %v1282 = vrcp.pop %v1281
  %v1283 = vmul.f32 1.0, %v1282
  %v1285 = vrot.slane %v1277, 4
  %v1287 = vtanh.pop %v1285
  %v1288 = vrot.slane %v1277, 6
  %v1290 = vxor.u32 %v1288, 2147483648
  %v1291 = vmul.f32 %v1290, 1.442695
  %v1292 = vpow.pop %v1291
  %v1293 = vadd.f32 %v1292, 1.0
  %v1294 = vrcp.pop %v1293
  %v1295 = vmul.f32 1.0, %v1294
  %v1297 = vrot.slane %v1283, 2
  %v1299 = vmul.f32 %v1297, %v1164
  %v1300 = vmul.f32 %v1283, %v1287
  %v1301 = vadd.f32 %v1299, %v1300
  %v1302 = vtanh.pop %v1301
  %v1303 = vmul.f32 %v1295, %v1302
  %v1304 = vpack.c.bf16 %v1303, %v1303
  %s1305 = scalar_lea.vmem %s2, 7
  %1306 = vst [vmem:[%s1305] sm:$0x1] %v1304
  %1307 = vst [vmem:[#allocation2] sm:$0x3] %v1303
  %1308 = vst [vmem:[#allocation3] sm:$0x3] %v1301
  // Predicated region
  $region14: #{neural_language_model_forward.4} parent=0 // pred_check
    _
  $region15: #{neural_language_model_forward.4} parent=0 // pred_check_branch
    %1310 = sbr.rel (0) target = $region17
  $region16: #{neural_language_model_forward.4} parent=0 // pred_region
    _
  $region17: #{neural_language_model_forward.4} parent=0 // pred_fallthru
    _
  // Predicated region
  $region18: #{neural_language_model_forward.4} parent=0 // pred_check
    _
  $region19: #{neural_language_model_forward.4} parent=0 // pred_check_branch
    %1312 = sbr.rel (0) target = $region21
  $region20: #{neural_language_model_forward.4} parent=0 // pred_region
    _
  $region21: #{neural_language_model_forward.4} parent=0 // pred_fallthru
    _

</llo_original>
